<compile_context>
chip_gen: v7x
topology: tpu7x:2x2x1
jax: 0.10.0
libtpu: 0.0.40
codegen_flags: <defaults>
</compile_context>

<pallas_src>
import functools

import jax
import jax.numpy as jnp
import numpy as np
from jax.experimental import pallas as pl
from jax.experimental.pallas import tpu as pltpu

LN_EPS = 1e-5


# ------------------------------ tiling helpers ------------------------------ #

def _pick_tm(n, h):
    """Largest row-tile (multiple of 16) that divides n and keeps a block small."""
    target = max(64, min(512, (4 << 20) // max(1, h * 4)))   # <= ~4 MiB / block
    for tm in (512, 256, 128, 64, 32, 16):
        if tm <= target and tm <= n and n % tm == 0:
            return tm
    return n   # fall back to a single full-extent block (still legal layout)


def _compiler_params(tm, h, itemsize):
    # Conservative per-call VMEM request: double-buffered x-in / out, resident
    # bf16 weight, param rows, plus f32 temporaries.  Clamped so it also fits
    # v7x (64 MiB physical / 32 MiB default scoped VMEM).
    est = (2 * 2 * tm * h * itemsize      # x in + out, double-buffered
           + h * h * 2                    # resident bf16 weight
           + 3 * 2 * h * 4                # bias / gamma / beta rows
           + 4 * tm * h * 4)              # f32 temporaries
    vmem = int(min(max(2 * est, 8 << 20), 30 << 20))
    return pltpu.CompilerParams(dimension_semantics=("parallel",),
                                vmem_limit_bytes=vmem)


# ------------------------------ Pallas kernels ------------------------------ #

def _ln_rows(x, g_ref, b_ref):
    """LayerNorm over the last axis of an f32 (TM, H) tile (single-pass stats)."""
    inv_h = 1.0 / x.shape[-1]
    s = jnp.sum(x, axis=-1, keepdims=True)
    ss = jnp.sum(x * x, axis=-1, keepdims=True)
    mean = s * inv_h
    var = ss * inv_h - mean * mean            # biased variance (PyTorch LN)
    rstd = jax.lax.rsqrt(var + LN_EPS)
    return (x - mean) * rstd * g_ref[...].astype(jnp.float32) \
        + b_ref[...].astype(jnp.float32)


def _fused_norm_linear_residual_kernel(x_ref, w_ref, b_ref, g_ref, bt_ref, o_ref,
                                       *, pre_norm, no_norm):
    """One pass: pre-norm  -> out = x + (LN(x) @ W + b)
                 post-norm -> out = LN(x + (x @ W + b))"""
    x = x_ref[...].astype(jnp.float32)                         # (TM, H)
    bias = b_ref[...].astype(jnp.float32)                      # (1, H)
    if pre_norm:
        y = x if no_norm else _ln_rows(x, g_ref, bt_ref)
        acc = jnp.dot(y.astype(jnp.bfloat16), w_ref[...],
                      preferred_element_type=jnp.float32)
        out = x + acc + bias
    else:
        acc = jnp.dot(x.astype(jnp.bfloat16), w_ref[...],
                      preferred_element_type=jnp.float32)
        res = x + acc + bias
        out = res if no_norm else _ln_rows(res, g_ref, bt_ref)
    o_ref[...] = out.astype(o_ref.dtype)


def _layernorm_kernel(x_ref, g_ref, b_ref, o_ref):
    o_ref[...] = _ln_rows(x_ref[...].astype(jnp.float32), g_ref, b_ref
                          ).astype(o_ref.dtype)


def _residual_add_kernel(x_ref, y_ref, o_ref):
    # dropout p=0.0 is the identity, so the residual is a plain add.
    o_ref[...] = x_ref[...] + y_ref[...]


def _linear_kernel(x_ref, w_ref, b_ref, o_ref):
    acc = jnp.dot(x_ref[...].astype(jnp.bfloat16), w_ref[...],
                  preferred_element_type=jnp.float32)
    o_ref[...] = (acc + b_ref[...].astype(jnp.float32)).astype(o_ref.dtype)


# ------------------------------ thin wrappers ------------------------------- #

def fused_sublayer_linear(x, w, b, gamma, beta, *, pre_norm=True, no_norm=False,
                          donate_x=False):
    """Fully fused SublayerConnection(x, Linear) in a single pallas_call."""
    shp = x.shape
    h = shp[-1]
    x2 = x.reshape(-1, h)
    n = x2.shape[0]
    tm = _pick_tm(n, h)
    kernel = functools.partial(_fused_norm_linear_residual_kernel,
                               pre_norm=pre_norm, no_norm=no_norm)
    out = pl.pallas_call(
        kernel,
        out_shape=jax.ShapeDtypeStruct((n, h), x2.dtype),
        grid=(n // tm,),
        in_specs=[
            pl.BlockSpec((tm, h), lambda i: (i, 0)),     # x rows (pipelined)
            pl.BlockSpec((h, h), lambda i: (0, 0)),      # W resident in VMEM
            pl.BlockSpec((1, h), lambda i: (0, 0)),      # bias
            pl.BlockSpec((1, h), lambda i: (0, 0)),      # gamma
            pl.BlockSpec((1, h), lambda i: (0, 0)),      # beta
        ],
        out_specs=pl.BlockSpec((tm, h), lambda i: (i, 0)),
        compiler_params=_compiler_params(tm, h, x2.dtype.itemsize),
        input_output_aliases=({0: 0} if donate_x else {}),
    )(x2, w.astype(jnp.bfloat16), b.reshape(1, h).astype(jnp.float32),
      gamma.reshape(1, h).astype(jnp.float32),
      beta.reshape(1, h).astype(jnp.float32))
    return out.reshape(shp)


def pallas_layer_norm(x, gamma, beta):
    shp = x.shape
    h = shp[-1]
    x2 = x.reshape(-1, h)
    n = x2.shape[0]
    tm = _pick_tm(n, h)
    out = pl.pallas_call(
        _layernorm_kernel,
        out_shape=jax.ShapeDtypeStruct((n, h), x2.dtype),
        grid=(n // tm,),
        in_specs=[pl.BlockSpec((tm, h), lambda i: (i, 0)),
                  pl.BlockSpec((1, h), lambda i: (0, 0)),
                  pl.BlockSpec((1, h), lambda i: (0, 0))],
        out_specs=pl.BlockSpec((tm, h), lambda i: (i, 0)),
        compiler_params=_compiler_params(tm, h, x2.dtype.itemsize),
    )(x2, gamma.reshape(1, h).astype(jnp.float32),
      beta.reshape(1, h).astype(jnp.float32))
    return out.reshape(shp)


def pallas_residual_add(x, y):
    shp = x.shape
    h = shp[-1]
    x2 = x.reshape(-1, h)
    y2 = y.reshape(-1, h)
    n = x2.shape[0]
    tm = _pick_tm(n, h)
    out = pl.pallas_call(
        _residual_add_kernel,
        out_shape=jax.ShapeDtypeStruct((n, h), x2.dtype),
        grid=(n // tm,),
        in_specs=[pl.BlockSpec((tm, h), lambda i: (i, 0)),
                  pl.BlockSpec((tm, h), lambda i: (i, 0))],
        out_specs=pl.BlockSpec((tm, h), lambda i: (i, 0)),
        compiler_params=_compiler_params(tm, h, x2.dtype.itemsize),
    )(x2, y2)
    return out.reshape(shp)


def pallas_linear(x, w, b):
    shp = x.shape
    h = shp[-1]
    x2 = x.reshape(-1, h)
    n = x2.shape[0]
    tm = _pick_tm(n, h)
    out = pl.pallas_call(
        _linear_kernel,
        out_shape=jax.ShapeDtypeStruct((n, h), x2.dtype),
        grid=(n // tm,),
        in_specs=[pl.BlockSpec((tm, h), lambda i: (i, 0)),
                  pl.BlockSpec((h, h), lambda i: (0, 0)),
                  pl.BlockSpec((1, h), lambda i: (0, 0))],
        out_specs=pl.BlockSpec((tm, h), lambda i: (i, 0)),
        compiler_params=_compiler_params(tm, h, x2.dtype.itemsize),
    )(x2, w.astype(jnp.bfloat16), b.reshape(1, h).astype(jnp.float32))
    return out.reshape(shp)


# --------------------------- SublayerConnection ----------------------------- #

class PallasLinear:
    """(H, H) linear sublayer; exposing w/b lets SublayerConnection fuse it."""

    def __init__(self, w, b):
        self.w = w
        self.b = b

    def __call__(self, x):
        return pallas_linear(x, self.w, self.b)


class SublayerConnection:
    def __init__(self, size: int, dropout: float = 0.0, pre_norm: bool = True,
                 no_norm: bool = False):
        self.size = size
        self.pre_norm = pre_norm
        self.no_norm = no_norm
        self.dropout = dropout
        # TODO(synk): dropout > 0.0 (training-mode RNG masking) not implemented;
        # default dropout=0.0 is the identity, matching inference semantics.
        assert dropout == 0.0
        # nn.LayerNorm default init: weight = 1, bias = 0 (deterministic).
        self.gamma = jnp.ones((size,), jnp.float32)
        self.beta = jnp.zeros((size,), jnp.float32)

    def _norm(self, x):
        if self.no_norm:
            return x
        return pallas_layer_norm(x, self.gamma, self.beta)

    def __call__(self, x, sublayer):
        # Fast path: LN + matmul + bias + residual fused into one kernel.
        if isinstance(sublayer, PallasLinear) and self.dropout == 0.0:
            return fused_sublayer_linear(x, sublayer.w, sublayer.b,
                                         self.gamma, self.beta,
                                         pre_norm=self.pre_norm,
                                         no_norm=self.no_norm)
        # Generic path for arbitrary callables (still tiled Pallas kernels).
        if self.pre_norm:
            return pallas_residual_add(x, sublayer(self._norm(x)))
        else:
            return self._norm(pallas_residual_add(x, sublayer(x)))


# ---------------------------------- main ------------------------------------ #

if __name__ == "__main__":
    # Lane-dense hidden (multiple of 128) and enough rows to exercise tiling.
    B, S, H = 2, 256, 128
    key = jax.random.PRNGKey(0)
    kx, kw, kb = jax.random.split(key, 3)

    x = jax.random.normal(kx, (B, S, H), dtype=jnp.float32)
    w = jax.random.normal(kw, (H, H), dtype=jnp.float32) * 0.05
    b = jax.random.normal(kb, (H,), dtype=jnp.float32) * 0.05
    linear = PallasLinear(w, b)

    # ---- pure-JAX references ----
    def ref_ln(v, g, bta):
        m = jnp.mean(v, axis=-1, keepdims=True)
        var = jnp.mean((v - m) ** 2, axis=-1, keepdims=True)
        return (v - m) * jax.lax.rsqrt(var + LN_EPS) * g + bta

    def ref_linear(v):
        return jnp.dot(v.astype(jnp.bfloat16), w.astype(jnp.bfloat16),
                       preferred_element_type=jnp.float32) + b

    # 1) pre-norm, fused fast path: out = x + (LN(x) @ W + b)
    blk_pre = SublayerConnection(size=H, dropout=0.0, pre_norm=True)
    out_pre = jax.block_until_ready(blk_pre(x, linear))
    ref_pre = x + ref_linear(ref_ln(x, blk_pre.gamma, blk_pre.beta))
    np.testing.assert_allclose(np.asarray(out_pre), np.asarray(ref_pre),
                               rtol=2e-2, atol=2e-2)

    # 2) post-norm, fused fast path: out = LN(x + (x @ W + b))
    blk_post = SublayerConnection(size=H, dropout=0.0, pre_norm=False)
    out_post = jax.block_until_ready(blk_post(x, linear))
    ref_post = ref_ln(x + ref_linear(x), blk_post.gamma, blk_post.beta)
    np.testing.assert_allclose(np.asarray(out_post), np.asarray(ref_post),
                               rtol=2e-2, atol=2e-2)

    # 3) generic (unfused) path with an arbitrary callable sublayer.
    blk_gen = SublayerConnection(size=H, dropout=0.0, pre_norm=True)
    out_gen = jax.block_until_ready(blk_gen(x, jnp.tanh))
    ref_gen = x + jnp.tanh(ref_ln(x, blk_gen.gamma, blk_gen.beta))
    np.testing.assert_allclose(np.asarray(out_gen), np.asarray(ref_gen),
                               rtol=1e-4, atol=1e-4)

    print("KERNEL_OK")
</pallas_src>

<mosaic_0001>
module attributes {stable_mosaic.version = 11 : i64} {
  func.func @_fused_norm_linear_residual_kernel(%arg0: i32, %arg1: memref<512x128xf32, #tpu.memory_space<vmem>>, %arg2: memref<128x128xbf16, #tpu.memory_space<vmem>>, %arg3: memref<1x128xf32, #tpu.memory_space<vmem>>, %arg4: memref<1x128xf32, #tpu.memory_space<vmem>>, %arg5: memref<1x128xf32, #tpu.memory_space<vmem>>, %arg6: memref<512x128xf32, #tpu.memory_space<vmem>>) attributes {dimension_semantics = [#tpu.dimension_semantics<parallel>], iteration_bounds = array<i64: 1>, scalar_prefetch = 0 : i64, scratch_operands = 0 : i64, tpu.core_type = #tpu.core_type<tc>, window_params = [{transform_indices = @transform_0, window_bounds = array<i64: 512, 128>}, {pipeline_mode = #tpu.pipeline_mode<synchronous>, transform_indices = @transform_1, window_bounds = array<i64: 128, 128>}, {pipeline_mode = #tpu.pipeline_mode<synchronous>, transform_indices = @transform_2, window_bounds = array<i64: 1, 128>}, {pipeline_mode = #tpu.pipeline_mode<synchronous>, transform_indices = @transform_3, window_bounds = array<i64: 1, 128>}, {pipeline_mode = #tpu.pipeline_mode<synchronous>, transform_indices = @transform_4, window_bounds = array<i64: 1, 128>}, {transform_indices = @transform_5, window_bounds = array<i64: 512, 128>}]} {
    %c0 = arith.constant 0 : index
    %c0_0 = arith.constant 0 : index
    %0 = vector.load %arg1[%c0, %c0_0] : memref<512x128xf32, #tpu.memory_space<vmem>>, vector<512x128xf32>
    %c0_1 = arith.constant 0 : index
    %c0_2 = arith.constant 0 : index
    %1 = vector.load %arg3[%c0_1, %c0_2] : memref<1x128xf32, #tpu.memory_space<vmem>>, vector<1x128xf32>
    %cst = arith.constant dense<0.000000e+00> : vector<512xf32>
    %2 = vector.multi_reduction <add>, %0, %cst [1] : vector<512x128xf32> to vector<512xf32>
    %3 = vector.shape_cast %2 : vector<512xf32> to vector<512x1xf32>
    %4 = arith.mulf %0, %0 : vector<512x128xf32>
    %cst_3 = arith.constant dense<0.000000e+00> : vector<512xf32>
    %5 = vector.multi_reduction <add>, %4, %cst_3 [1] : vector<512x128xf32> to vector<512xf32>
    %6 = vector.shape_cast %5 : vector<512xf32> to vector<512x1xf32>
    %cst_4 = arith.constant 7.812500e-03 : f32
    %7 = vector.broadcast %cst_4 : f32 to vector<512x1xf32>
    %8 = arith.mulf %3, %7 : vector<512x1xf32>
    %cst_5 = arith.constant 7.812500e-03 : f32
    %9 = vector.broadcast %cst_5 : f32 to vector<512x1xf32>
    %10 = arith.mulf %6, %9 : vector<512x1xf32>
    %11 = arith.mulf %8, %8 : vector<512x1xf32>
    %12 = arith.subf %10, %11 : vector<512x1xf32>
    %cst_6 = arith.constant 9.99999974E-6 : f32
    %13 = vector.broadcast %cst_6 : f32 to vector<512x1xf32>
    %14 = arith.addf %12, %13 : vector<512x1xf32>
    %15 = math.rsqrt %14 : vector<512x1xf32>
    %16 = vector.broadcast %8 : vector<512x1xf32> to vector<512x128xf32>
    %17 = arith.subf %0, %16 : vector<512x128xf32>
    %18 = vector.broadcast %15 : vector<512x1xf32> to vector<512x128xf32>
    %19 = arith.mulf %17, %18 : vector<512x128xf32>
    %c0_7 = arith.constant 0 : index
    %c0_8 = arith.constant 0 : index
    %20 = vector.load %arg4[%c0_7, %c0_8] : memref<1x128xf32, #tpu.memory_space<vmem>>, vector<1x128xf32>
    %21 = vector.broadcast %20 : vector<1x128xf32> to vector<512x128xf32>
    %22 = arith.mulf %19, %21 : vector<512x128xf32>
    %c0_9 = arith.constant 0 : index
    %c0_10 = arith.constant 0 : index
    %23 = vector.load %arg5[%c0_9, %c0_10] : memref<1x128xf32, #tpu.memory_space<vmem>>, vector<1x128xf32>
    %24 = vector.broadcast %23 : vector<1x128xf32> to vector<512x128xf32>
    %25 = arith.addf %22, %24 : vector<512x128xf32>
    %26 = arith.truncf %25 : vector<512x128xf32> to vector<512x128xbf16>
    %c0_11 = arith.constant 0 : index
    %c0_12 = arith.constant 0 : index
    %27 = vector.load %arg2[%c0_11, %c0_12] : memref<128x128xbf16, #tpu.memory_space<vmem>>, vector<128x128xbf16>
    %cst_13 = arith.constant dense<0.000000e+00> : vector<512x128xf32>
    %28 = tpu.matmul %26, %27, %cst_13 {dimension_numbers = #tpu.dot_dimension_numbers<[1], [0], [0], [1], [0, 0, 1, 1], [], []>} : vector<512x128xbf16>, vector<128x128xbf16>, vector<512x128xf32> -> vector<512x128xf32>
    %29 = arith.addf %0, %28 : vector<512x128xf32>
    %30 = vector.broadcast %1 : vector<1x128xf32> to vector<512x128xf32>
    %31 = arith.addf %29, %30 : vector<512x128xf32>
    %c0_14 = arith.constant 0 : index
    %c0_15 = arith.constant 0 : index
    %32 = vector.load %arg6[%c0_14, %c0_15] : memref<512x128xf32, #tpu.memory_space<vmem>>, vector<512x128xf32>
    tpu.vector_store %arg6[%c0_14, %c0_15], %31 {strides = array<i32>} : memref<512x128xf32, #tpu.memory_space<vmem>>, vector<512x128xf32>,
    return
  }
  func.func @transform_0(%arg0: i32) -> (i32, i32) {
    %c0_i32 = arith.constant 0 : i32
    %c0_i32_0 = arith.constant 0 : i32
    return %arg0, %c0_i32 : i32, i32
  }
  func.func @transform_1(%arg0: i32) -> (i32, i32) {
    %c0_i32 = arith.constant 0 : i32
    %c0_i32_0 = arith.constant 0 : i32
    %c0_i32_1 = arith.constant 0 : i32
    return %c0_i32, %c0_i32_0 : i32, i32
  }
  func.func @transform_2(%arg0: i32) -> (i32, i32) {
    %c0_i32 = arith.constant 0 : i32
    %c0_i32_0 = arith.constant 0 : i32
    %c0_i32_1 = arith.constant 0 : i32
    return %c0_i32, %c0_i32_0 : i32, i32
  }
  func.func @transform_3(%arg0: i32) -> (i32, i32) {
    %c0_i32 = arith.constant 0 : i32
    %c0_i32_0 = arith.constant 0 : i32
    %c0_i32_1 = arith.constant 0 : i32
    return %c0_i32, %c0_i32_0 : i32, i32
  }
  func.func @transform_4(%arg0: i32) -> (i32, i32) {
    %c0_i32 = arith.constant 0 : i32
    %c0_i32_0 = arith.constant 0 : i32
    %c0_i32_1 = arith.constant 0 : i32
    return %c0_i32, %c0_i32_0 : i32, i32
  }
  func.func @transform_5(%arg0: i32) -> (i32, i32) {
    %c0_i32 = arith.constant 0 : i32
    %c0_i32_0 = arith.constant 0 : i32
    return %arg0, %c0_i32 : i32, i32
  }
}

</mosaic_0001>

<llo_original>
// kernel: tpu_custom_call.1
$region0: #{tpu_custom_call.1}
  #allocation0 [shape = 'u32[]', space=smem, size = 0x4, offset = 0x4, fixed_abs, tag = 'smem constant byte address 0x4 - core index']
  #allocation1 [shape = 'u32[144,128]{1,0:T(1,128)}', space=vmem, size = 0x12000, scoped, tag = 'internal scratch']
  %s0 = inlined_call_operand.hbm [shape: f32[512,128], index: 0, kind: input, shape index: {}]
  %s1 = inlined_call_operand.hbm [shape: bf16[128,128], index: 1, kind: input, shape index: {}]
  %s2 = inlined_call_operand.vmem [shape: f32[1,128], index: 2, kind: input, shape index: {}]
  %s3 = inlined_call_operand.vmem [shape: f32[1,128], index: 3, kind: input, shape index: {}]
  %s4 = inlined_call_operand.vmem [shape: f32[1,128], index: 4, kind: input, shape index: {}]
  %s5 = inlined_call_operand.hbm [shape: f32[512,128], index: 5, kind: output, shape index: {}]
  %s6 = sld [smem:[#allocation0]]
  $region38: #{tpu_custom_call.1} parent=0
    _
  %s8 = ssub.s32 1, %s6
  %s9 = scalar_select 0, %s8, %s6
  $region1: #{tpu_custom_call.1} parent=0
    #allocation2 [shape = 'u8[262144]{0}', space=vmem, size = 0x40000, scoped, tag = 'input window, operand 0, single buffered']
    #allocation3 [shape = 's32[1]{0}', space=sflag, size = 0x4, scoped, tag = 'scoped memory for tpu_custom_call.1']
    #allocation4 [shape = 's32[1]{0}', space=sflag, size = 0x4, scoped, tag = 'scoped memory for tpu_custom_call.1']
    #allocation5 [shape = 'u8[32768]{0}', space=vmem, size = 0x8000, scoped, tag = 'input window, operand 1, single buffered']
    #allocation6 [shape = 's32[1]{0}', space=sflag, size = 0x4, scoped, tag = 'scoped memory for tpu_custom_call.1']
    #allocation7 [shape = 'u8[262144]{0}', space=vmem, size = 0x40000, scoped, tag = 'output window, operand 0, single buffered']
    %10 = vsyncpa [#allocation3], 0
    %11 = vsyncpa [#allocation6], 0
    %12 = vsyncpa [#allocation4], 0
    // Predicated region
    $region2: #{tpu_custom_call.1} parent=1 // pred_check
      _
    $region3: #{tpu_custom_call.1} parent=1 // pred_check_branch
      %14 = sbr.rel (0) target = $region5
    $region4: #{tpu_custom_call.1} parent=1 // pred_region
      %s16 = ssub.s32 8192, 8192
      %17 = vsyncadd [#allocation3], %s16
      %s18 = sshll.u32 [#allocation2], 4
      %s19 = int_to_ptr.vmem [resolvable:$true] %s18
      %24 = dma.hbm_to_vmem [thread:$0]  %s0, 8192, %s19, [#allocation3], 128, 128, 8
    $region5: #{tpu_custom_call.1} parent=1 // pred_fallthru
      _
    // Predicated region
    $region6: #{tpu_custom_call.1} parent=1 // pred_check
      _
    $region7: #{tpu_custom_call.1} parent=1 // pred_check_branch
      %26 = sbr.rel (0) target = $region9
    $region8: #{tpu_custom_call.1} parent=1 // pred_region
      %s28 = ssub.s32 1024, 1024
      %29 = vsyncadd [#allocation6], %s28
      %s30 = sshll.u32 [#allocation5], 4
      %s31 = int_to_ptr.vmem [resolvable:$true] %s30
      %36 = dma.hbm_to_vmem [thread:$0]  %s1, 1024, %s31, [#allocation6], 64, 64, 4
    $region9: #{tpu_custom_call.1} parent=1 // pred_fallthru
      _
    // Predicated region
    $region10: #{tpu_custom_call.1} parent=1 // pred_check
      _
    $region11: #{tpu_custom_call.1} parent=1 // pred_check_branch
      %38 = sbr.rel (0) target = $region13
    $region12: #{tpu_custom_call.1} parent=1 // pred_region
      _
    $region13: #{tpu_custom_call.1} parent=1 // pred_fallthru
      _
    // Predicated region
    $region14: #{tpu_custom_call.1} parent=1 // pred_check
      _
    $region15: #{tpu_custom_call.1} parent=1 // pred_check_branch
      %40 = sbr.rel (0) target = $region17
    $region16: #{tpu_custom_call.1} parent=1 // pred_region
      _
    $region17: #{tpu_custom_call.1} parent=1 // pred_fallthru
      _
    // Predicated region
    $region18: #{tpu_custom_call.1} parent=1 // pred_check
      _
    $region19: #{tpu_custom_call.1} parent=1 // pred_check_branch
      %42 = sbr.rel (0) target = $region21
    $region20: #{tpu_custom_call.1} parent=1 // pred_region
      _
    $region21: #{tpu_custom_call.1} parent=1 // pred_fallthru
      _
    // Predicated region
    $region22: #{tpu_custom_call.1} parent=1 // pred_check
      _
    $region23: #{tpu_custom_call.1} parent=1 // pred_check_branch
      %44 = sbr.rel (0) target = $region25
    $region24: #{tpu_custom_call.1} parent=1 // pred_region
      %45 = dma.done [#allocation3], 8192
    $region25: #{tpu_custom_call.1} parent=1 // pred_fallthru
      _
    // Predicated region
    $region26: #{tpu_custom_call.1} parent=1 // pred_check
      _
    $region27: #{tpu_custom_call.1} parent=1 // pred_check_branch
      %47 = sbr.rel (0) target = $region29
    $region28: #{tpu_custom_call.1} parent=1 // pred_region
      %48 = dma.done [#allocation6], 1024
    $region29: #{tpu_custom_call.1} parent=1 // pred_fallthru
      _
    %v50 = vld [vmem:[#allocation2] sm:$0xff]
    %v51 = vld [vmem:[#allocation2 + $0x8] sm:$0xff]
    %v52 = vld [vmem:[#allocation2 + $0x10] sm:$0xff]
    %v53 = vld [vmem:[#allocation2 + $0x18] sm:$0xff]
    %v54 = vld [vmem:[#allocation2 + $0x20] sm:$0xff]
    %v55 = vld [vmem:[#allocation2 + $0x28] sm:$0xff]
    %v56 = vld [vmem:[#allocation2 + $0x30] sm:$0xff]
    %v57 = vld [vmem:[#allocation2 + $0x38] sm:$0xff]
    %v58 = vld [vmem:[#allocation2 + $0x40] sm:$0xff]
    %v59 = vld [vmem:[#allocation2 + $0x48] sm:$0xff]
    %v60 = vld [vmem:[#allocation2 + $0x50] sm:$0xff]
    %v61 = vld [vmem:[#allocation2 + $0x58] sm:$0xff]
    %v62 = vld [vmem:[#allocation2 + $0x60] sm:$0xff]
    %v63 = vld [vmem:[#allocation2 + $0x68] sm:$0xff]
    %v64 = vld [vmem:[#allocation2 + $0x70] sm:$0xff]
    %v65 = vld [vmem:[#allocation2 + $0x78] sm:$0xff]
    %v66 = vld [vmem:[#allocation2 + $0x80] sm:$0xff]
    %v67 = vld [vmem:[#allocation2 + $0x88] sm:$0xff]
    %v68 = vld [vmem:[#allocation2 + $0x90] sm:$0xff]
    %v69 = vld [vmem:[#allocation2 + $0x98] sm:$0xff]
    %v70 = vld [vmem:[#allocation2 + $0xa0] sm:$0xff]
    %v71 = vld [vmem:[#allocation2 + $0xa8] sm:$0xff]
    %v72 = vld [vmem:[#allocation2 + $0xb0] sm:$0xff]
    %v73 = vld [vmem:[#allocation2 + $0xb8] sm:$0xff]
    %v74 = vld [vmem:[#allocation2 + $0xc0] sm:$0xff]
    %v75 = vld [vmem:[#allocation2 + $0xc8] sm:$0xff]
    %v76 = vld [vmem:[#allocation2 + $0xd0] sm:$0xff]
    %v77 = vld [vmem:[#allocation2 + $0xd8] sm:$0xff]
    %v78 = vld [vmem:[#allocation2 + $0xe0] sm:$0xff]
    %v79 = vld [vmem:[#allocation2 + $0xe8] sm:$0xff]
    %v80 = vld [vmem:[#allocation2 + $0xf0] sm:$0xff]
    %v81 = vld [vmem:[#allocation2 + $0xf8] sm:$0xff]
    %v82 = vld [vmem:[#allocation2 + $0x100] sm:$0xff]
    %v83 = vld [vmem:[#allocation2 + $0x108] sm:$0xff]
    %v84 = vld [vmem:[#allocation2 + $0x110] sm:$0xff]
    %v85 = vld [vmem:[#allocation2 + $0x118] sm:$0xff]
    %v86 = vld [vmem:[#allocation2 + $0x120] sm:$0xff]
    %v87 = vld [vmem:[#allocation2 + $0x128] sm:$0xff]
    %v88 = vld [vmem:[#allocation2 + $0x130] sm:$0xff]
    %v89 = vld [vmem:[#allocation2 + $0x138] sm:$0xff]
    %v90 = vld [vmem:[#allocation2 + $0x140] sm:$0xff]
    %v91 = vld [vmem:[#allocation2 + $0x148] sm:$0xff]
    %v92 = vld [vmem:[#allocation2 + $0x150] sm:$0xff]
    %v93 = vld [vmem:[#allocation2 + $0x158] sm:$0xff]
    %v94 = vld [vmem:[#allocation2 + $0x160] sm:$0xff]
    %v95 = vld [vmem:[#allocation2 + $0x168] sm:$0xff]
    %v96 = vld [vmem:[#allocation2 + $0x170] sm:$0xff]
    %v97 = vld [vmem:[#allocation2 + $0x178] sm:$0xff]
    %v98 = vld [vmem:[#allocation2 + $0x180] sm:$0xff]
    %v99 = vld [vmem:[#allocation2 + $0x188] sm:$0xff]
    %v100 = vld [vmem:[#allocation2 + $0x190] sm:$0xff]
    %v101 = vld [vmem:[#allocation2 + $0x198] sm:$0xff]
    %v102 = vld [vmem:[#allocation2 + $0x1a0] sm:$0xff]
    %v103 = vld [vmem:[#allocation2 + $0x1a8] sm:$0xff]
    %v104 = vld [vmem:[#allocation2 + $0x1b0] sm:$0xff]
    %v105 = vld [vmem:[#allocation2 + $0x1b8] sm:$0xff]
    %v106 = vld [vmem:[#allocation2 + $0x1c0] sm:$0xff]
    %v107 = vld [vmem:[#allocation2 + $0x1c8] sm:$0xff]
    %v108 = vld [vmem:[#allocation2 + $0x1d0] sm:$0xff]
    %v109 = vld [vmem:[#allocation2 + $0x1d8] sm:$0xff]
    %v110 = vld [vmem:[#allocation2 + $0x1e0] sm:$0xff]
    %v111 = vld [vmem:[#allocation2 + $0x1e8] sm:$0xff]
    %v112 = vld [vmem:[#allocation2 + $0x1f0] sm:$0xff]
    %v113 = vld [vmem:[#allocation2 + $0x1f8] sm:$0xff]
    %v114 = vld [vmem:[%s2] sm:$0x1]
    %115 = vadd.xlane.f32.xlu0 %v50
    %v116 = vpop.xlane.xlu0 %115
    %117 = vadd.xlane.f32.xlu0 %v51
    %v118 = vpop.xlane.xlu0 %117
    %119 = vadd.xlane.f32.xlu0 %v52
    %v120 = vpop.xlane.xlu0 %119
    %121 = vadd.xlane.f32.xlu0 %v53
    %v122 = vpop.xlane.xlu0 %121
    %123 = vadd.xlane.f32.xlu0 %v54
    %v124 = vpop.xlane.xlu0 %123
    %125 = vadd.xlane.f32.xlu0 %v55
    %v126 = vpop.xlane.xlu0 %125
    %127 = vadd.xlane.f32.xlu0 %v56
    %v128 = vpop.xlane.xlu0 %127
    %129 = vadd.xlane.f32.xlu0 %v57
    %v130 = vpop.xlane.xlu0 %129
    %131 = vadd.xlane.f32.xlu0 %v58
    %v132 = vpop.xlane.xlu0 %131
    %133 = vadd.xlane.f32.xlu0 %v59
    %v134 = vpop.xlane.xlu0 %133
    %135 = vadd.xlane.f32.xlu0 %v60
    %v136 = vpop.xlane.xlu0 %135
    %137 = vadd.xlane.f32.xlu0 %v61
    %v138 = vpop.xlane.xlu0 %137
    %139 = vadd.xlane.f32.xlu0 %v62
    %v140 = vpop.xlane.xlu0 %139
    %141 = vadd.xlane.f32.xlu0 %v63
    %v142 = vpop.xlane.xlu0 %141
    %143 = vadd.xlane.f32.xlu0 %v64
    %v144 = vpop.xlane.xlu0 %143
    %145 = vadd.xlane.f32.xlu0 %v65
    %v146 = vpop.xlane.xlu0 %145
    %147 = vadd.xlane.f32.xlu0 %v66
    %v148 = vpop.xlane.xlu0 %147
    %149 = vadd.xlane.f32.xlu0 %v67
    %v150 = vpop.xlane.xlu0 %149
    %151 = vadd.xlane.f32.xlu0 %v68
    %v152 = vpop.xlane.xlu0 %151
    %153 = vadd.xlane.f32.xlu0 %v69
    %v154 = vpop.xlane.xlu0 %153
    %155 = vadd.xlane.f32.xlu0 %v70
    %v156 = vpop.xlane.xlu0 %155
    %157 = vadd.xlane.f32.xlu0 %v71
    %v158 = vpop.xlane.xlu0 %157
    %159 = vadd.xlane.f32.xlu0 %v72
    %v160 = vpop.xlane.xlu0 %159
    %161 = vadd.xlane.f32.xlu0 %v73
    %v162 = vpop.xlane.xlu0 %161
    %163 = vadd.xlane.f32.xlu0 %v74
    %v164 = vpop.xlane.xlu0 %163
    %165 = vadd.xlane.f32.xlu0 %v75
    %v166 = vpop.xlane.xlu0 %165
    %167 = vadd.xlane.f32.xlu0 %v76
    %v168 = vpop.xlane.xlu0 %167
    %169 = vadd.xlane.f32.xlu0 %v77
    %v170 = vpop.xlane.xlu0 %169
    %171 = vadd.xlane.f32.xlu0 %v78
    %v172 = vpop.xlane.xlu0 %171
    %173 = vadd.xlane.f32.xlu0 %v79
    %v174 = vpop.xlane.xlu0 %173
    %175 = vadd.xlane.f32.xlu0 %v80
    %v176 = vpop.xlane.xlu0 %175
    %177 = vadd.xlane.f32.xlu0 %v81
    %v178 = vpop.xlane.xlu0 %177
    %179 = vadd.xlane.f32.xlu0 %v82
    %v180 = vpop.xlane.xlu0 %179
    %181 = vadd.xlane.f32.xlu0 %v83
    %v182 = vpop.xlane.xlu0 %181
    %183 = vadd.xlane.f32.xlu0 %v84
    %v184 = vpop.xlane.xlu0 %183
    %185 = vadd.xlane.f32.xlu0 %v85
    %v186 = vpop.xlane.xlu0 %185
    %187 = vadd.xlane.f32.xlu0 %v86
    %v188 = vpop.xlane.xlu0 %187
    %189 = vadd.xlane.f32.xlu0 %v87
    %v190 = vpop.xlane.xlu0 %189
    %191 = vadd.xlane.f32.xlu0 %v88
    %v192 = vpop.xlane.xlu0 %191
    %193 = vadd.xlane.f32.xlu0 %v89
    %v194 = vpop.xlane.xlu0 %193
    %195 = vadd.xlane.f32.xlu0 %v90
    %v196 = vpop.xlane.xlu0 %195
    %197 = vadd.xlane.f32.xlu0 %v91
    %v198 = vpop.xlane.xlu0 %197
    %199 = vadd.xlane.f32.xlu0 %v92
    %v200 = vpop.xlane.xlu0 %199
    %201 = vadd.xlane.f32.xlu0 %v93
    %v202 = vpop.xlane.xlu0 %201
    %203 = vadd.xlane.f32.xlu0 %v94
    %v204 = vpop.xlane.xlu0 %203
    %205 = vadd.xlane.f32.xlu0 %v95
    %v206 = vpop.xlane.xlu0 %205
    %207 = vadd.xlane.f32.xlu0 %v96
    %v208 = vpop.xlane.xlu0 %207
    %209 = vadd.xlane.f32.xlu0 %v97
    %v210 = vpop.xlane.xlu0 %209
    %211 = vadd.xlane.f32.xlu0 %v98
    %v212 = vpop.xlane.xlu0 %211
    %213 = vadd.xlane.f32.xlu0 %v99
    %v214 = vpop.xlane.xlu0 %213
    %215 = vadd.xlane.f32.xlu0 %v100
    %v216 = vpop.xlane.xlu0 %215
    %217 = vadd.xlane.f32.xlu0 %v101
    %v218 = vpop.xlane.xlu0 %217
    %219 = vadd.xlane.f32.xlu0 %v102
    %v220 = vpop.xlane.xlu0 %219
    %221 = vadd.xlane.f32.xlu0 %v103
    %v222 = vpop.xlane.xlu0 %221
    %223 = vadd.xlane.f32.xlu0 %v104
    %v224 = vpop.xlane.xlu0 %223
    %225 = vadd.xlane.f32.xlu0 %v105
    %v226 = vpop.xlane.xlu0 %225
    %227 = vadd.xlane.f32.xlu0 %v106
    %v228 = vpop.xlane.xlu0 %227
    %229 = vadd.xlane.f32.xlu0 %v107
    %v230 = vpop.xlane.xlu0 %229
    %231 = vadd.xlane.f32.xlu0 %v108
    %v232 = vpop.xlane.xlu0 %231
    %233 = vadd.xlane.f32.xlu0 %v109
    %v234 = vpop.xlane.xlu0 %233
    %235 = vadd.xlane.f32.xlu0 %v110
    %v236 = vpop.xlane.xlu0 %235
    %237 = vadd.xlane.f32.xlu0 %v111
    %v238 = vpop.xlane.xlu0 %237
    %239 = vadd.xlane.f32.xlu0 %v112
    %v240 = vpop.xlane.xlu0 %239
    %241 = vadd.xlane.f32.xlu0 %v113
    %v242 = vpop.xlane.xlu0 %241
    %v243 = vmul.f32 %v50, %v50
    %v244 = vmul.f32 %v51, %v51
    %v245 = vmul.f32 %v52, %v52
    %v246 = vmul.f32 %v53, %v53
    %v247 = vmul.f32 %v54, %v54
    %v248 = vmul.f32 %v55, %v55
    %v249 = vmul.f32 %v56, %v56
    %v250 = vmul.f32 %v57, %v57
    %v251 = vmul.f32 %v58, %v58
    %v252 = vmul.f32 %v59, %v59
    %v253 = vmul.f32 %v60, %v60
    %v254 = vmul.f32 %v61, %v61
    %v255 = vmul.f32 %v62, %v62
    %v256 = vmul.f32 %v63, %v63
    %v257 = vmul.f32 %v64, %v64
    %v258 = vmul.f32 %v65, %v65
    %v259 = vmul.f32 %v66, %v66
    %v260 = vmul.f32 %v67, %v67
    %v261 = vmul.f32 %v68, %v68
    %v262 = vmul.f32 %v69, %v69
    %v263 = vmul.f32 %v70, %v70
    %v264 = vmul.f32 %v71, %v71
    %v265 = vmul.f32 %v72, %v72
    %v266 = vmul.f32 %v73, %v73
    %v267 = vmul.f32 %v74, %v74
    %v268 = vmul.f32 %v75, %v75
    %v269 = vmul.f32 %v76, %v76
    %v270 = vmul.f32 %v77, %v77
    %v271 = vmul.f32 %v78, %v78
    %v272 = vmul.f32 %v79, %v79
    %v273 = vmul.f32 %v80, %v80
    %v274 = vmul.f32 %v81, %v81
    %v275 = vmul.f32 %v82, %v82
    %v276 = vmul.f32 %v83, %v83
    %v277 = vmul.f32 %v84, %v84
    %v278 = vmul.f32 %v85, %v85
    %v279 = vmul.f32 %v86, %v86
    %v280 = vmul.f32 %v87, %v87
    %v281 = vmul.f32 %v88, %v88
    %v282 = vmul.f32 %v89, %v89
    %v283 = vmul.f32 %v90, %v90
    %v284 = vmul.f32 %v91, %v91
    %v285 = vmul.f32 %v92, %v92
    %v286 = vmul.f32 %v93, %v93
    %v287 = vmul.f32 %v94, %v94
    %v288 = vmul.f32 %v95, %v95
    %v289 = vmul.f32 %v96, %v96
    %v290 = vmul.f32 %v97, %v97
    %v291 = vmul.f32 %v98, %v98
    %v292 = vmul.f32 %v99, %v99
    %v293 = vmul.f32 %v100, %v100
    %v294 = vmul.f32 %v101, %v101
    %v295 = vmul.f32 %v102, %v102
    %v296 = vmul.f32 %v103, %v103
    %v297 = vmul.f32 %v104, %v104
    %v298 = vmul.f32 %v105, %v105
    %v299 = vmul.f32 %v106, %v106
    %v300 = vmul.f32 %v107, %v107
    %v301 = vmul.f32 %v108, %v108
    %v302 = vmul.f32 %v109, %v109
    %v303 = vmul.f32 %v110, %v110
    %v304 = vmul.f32 %v111, %v111
    %v305 = vmul.f32 %v112, %v112
    %v306 = vmul.f32 %v113, %v113
    %307 = vadd.xlane.f32.xlu0 %v243
    %v308 = vpop.xlane.xlu0 %307
    %309 = vadd.xlane.f32.xlu0 %v244
    %v310 = vpop.xlane.xlu0 %309
    %311 = vadd.xlane.f32.xlu0 %v245
    %v312 = vpop.xlane.xlu0 %311
    %313 = vadd.xlane.f32.xlu0 %v246
    %v314 = vpop.xlane.xlu0 %313
    %315 = vadd.xlane.f32.xlu0 %v247
    %v316 = vpop.xlane.xlu0 %315
    %317 = vadd.xlane.f32.xlu0 %v248
    %v318 = vpop.xlane.xlu0 %317
    %319 = vadd.xlane.f32.xlu0 %v249
    %v320 = vpop.xlane.xlu0 %319
    %321 = vadd.xlane.f32.xlu0 %v250
    %v322 = vpop.xlane.xlu0 %321
    %323 = vadd.xlane.f32.xlu0 %v251
    %v324 = vpop.xlane.xlu0 %323
    %325 = vadd.xlane.f32.xlu0 %v252
    %v326 = vpop.xlane.xlu0 %325
    %327 = vadd.xlane.f32.xlu0 %v253
    %v328 = vpop.xlane.xlu0 %327
    %329 = vadd.xlane.f32.xlu0 %v254
    %v330 = vpop.xlane.xlu0 %329
    %331 = vadd.xlane.f32.xlu0 %v255
    %v332 = vpop.xlane.xlu0 %331
    %333 = vadd.xlane.f32.xlu0 %v256
    %v334 = vpop.xlane.xlu0 %333
    %335 = vadd.xlane.f32.xlu0 %v257
    %v336 = vpop.xlane.xlu0 %335
    %337 = vadd.xlane.f32.xlu0 %v258
    %v338 = vpop.xlane.xlu0 %337
    %339 = vadd.xlane.f32.xlu0 %v259
    %v340 = vpop.xlane.xlu0 %339
    %341 = vadd.xlane.f32.xlu0 %v260
    %v342 = vpop.xlane.xlu0 %341
    %343 = vadd.xlane.f32.xlu0 %v261
    %v344 = vpop.xlane.xlu0 %343
    %345 = vadd.xlane.f32.xlu0 %v262
    %v346 = vpop.xlane.xlu0 %345
    %347 = vadd.xlane.f32.xlu0 %v263
    %v348 = vpop.xlane.xlu0 %347
    %349 = vadd.xlane.f32.xlu0 %v264
    %v350 = vpop.xlane.xlu0 %349
    %351 = vadd.xlane.f32.xlu0 %v265
    %v352 = vpop.xlane.xlu0 %351
    %353 = vadd.xlane.f32.xlu0 %v266
    %v354 = vpop.xlane.xlu0 %353
    %355 = vadd.xlane.f32.xlu0 %v267
    %v356 = vpop.xlane.xlu0 %355
    %357 = vadd.xlane.f32.xlu0 %v268
    %v358 = vpop.xlane.xlu0 %357
    %359 = vadd.xlane.f32.xlu0 %v269
    %v360 = vpop.xlane.xlu0 %359
    %361 = vadd.xlane.f32.xlu0 %v270
    %v362 = vpop.xlane.xlu0 %361
    %363 = vadd.xlane.f32.xlu0 %v271
    %v364 = vpop.xlane.xlu0 %363
    %365 = vadd.xlane.f32.xlu0 %v272
    %v366 = vpop.xlane.xlu0 %365
    %367 = vadd.xlane.f32.xlu0 %v273
    %v368 = vpop.xlane.xlu0 %367
    %369 = vadd.xlane.f32.xlu0 %v274
    %v370 = vpop.xlane.xlu0 %369
    %371 = vadd.xlane.f32.xlu0 %v275
    %v372 = vpop.xlane.xlu0 %371
    %373 = vadd.xlane.f32.xlu0 %v276
    %v374 = vpop.xlane.xlu0 %373
    %375 = vadd.xlane.f32.xlu0 %v277
    %v376 = vpop.xlane.xlu0 %375
    %377 = vadd.xlane.f32.xlu0 %v278
    %v378 = vpop.xlane.xlu0 %377
    %379 = vadd.xlane.f32.xlu0 %v279
    %v380 = vpop.xlane.xlu0 %379
    %381 = vadd.xlane.f32.xlu0 %v280
    %v382 = vpop.xlane.xlu0 %381
    %383 = vadd.xlane.f32.xlu0 %v281
    %v384 = vpop.xlane.xlu0 %383
    %385 = vadd.xlane.f32.xlu0 %v282
    %v386 = vpop.xlane.xlu0 %385
    %387 = vadd.xlane.f32.xlu0 %v283
    %v388 = vpop.xlane.xlu0 %387
    %389 = vadd.xlane.f32.xlu0 %v284
    %v390 = vpop.xlane.xlu0 %389
    %391 = vadd.xlane.f32.xlu0 %v285
    %v392 = vpop.xlane.xlu0 %391
    %393 = vadd.xlane.f32.xlu0 %v286
    %v394 = vpop.xlane.xlu0 %393
    %395 = vadd.xlane.f32.xlu0 %v287
    %v396 = vpop.xlane.xlu0 %395
    %397 = vadd.xlane.f32.xlu0 %v288
    %v398 = vpop.xlane.xlu0 %397
    %399 = vadd.xlane.f32.xlu0 %v289
    %v400 = vpop.xlane.xlu0 %399
    %401 = vadd.xlane.f32.xlu0 %v290
    %v402 = vpop.xlane.xlu0 %401
    %403 = vadd.xlane.f32.xlu0 %v291
    %v404 = vpop.xlane.xlu0 %403
    %405 = vadd.xlane.f32.xlu0 %v292
    %v406 = vpop.xlane.xlu0 %405
    %407 = vadd.xlane.f32.xlu0 %v293
    %v408 = vpop.xlane.xlu0 %407
    %409 = vadd.xlane.f32.xlu0 %v294
    %v410 = vpop.xlane.xlu0 %409
    %411 = vadd.xlane.f32.xlu0 %v295
    %v412 = vpop.xlane.xlu0 %411
    %413 = vadd.xlane.f32.xlu0 %v296
    %v414 = vpop.xlane.xlu0 %413
    %415 = vadd.xlane.f32.xlu0 %v297
    %v416 = vpop.xlane.xlu0 %415
    %417 = vadd.xlane.f32.xlu0 %v298
    %v418 = vpop.xlane.xlu0 %417
    %419 = vadd.xlane.f32.xlu0 %v299
    %v420 = vpop.xlane.xlu0 %419
    %421 = vadd.xlane.f32.xlu0 %v300
    %v422 = vpop.xlane.xlu0 %421
    %423 = vadd.xlane.f32.xlu0 %v301
    %v424 = vpop.xlane.xlu0 %423
    %425 = vadd.xlane.f32.xlu0 %v302
    %v426 = vpop.xlane.xlu0 %425
    %427 = vadd.xlane.f32.xlu0 %v303
    %v428 = vpop.xlane.xlu0 %427
    %429 = vadd.xlane.f32.xlu0 %v304
    %v430 = vpop.xlane.xlu0 %429
    %431 = vadd.xlane.f32.xlu0 %v305
    %v432 = vpop.xlane.xlu0 %431
    %433 = vadd.xlane.f32.xlu0 %v306
    %v434 = vpop.xlane.xlu0 %433
    %v435 = vmul.f32 %v116, 0.0078125
    %v436 = vmul.f32 %v118, 0.0078125
    %v437 = vmul.f32 %v120, 0.0078125
    %v438 = vmul.f32 %v122, 0.0078125
    %v439 = vmul.f32 %v124, 0.0078125
    %v440 = vmul.f32 %v126, 0.0078125
    %v441 = vmul.f32 %v128, 0.0078125
    %v442 = vmul.f32 %v130, 0.0078125
    %v443 = vmul.f32 %v132, 0.0078125
    %v444 = vmul.f32 %v134, 0.0078125
    %v445 = vmul.f32 %v136, 0.0078125
    %v446 = vmul.f32 %v138, 0.0078125
    %v447 = vmul.f32 %v140, 0.0078125
    %v448 = vmul.f32 %v142, 0.0078125
    %v449 = vmul.f32 %v144, 0.0078125
    %v450 = vmul.f32 %v146, 0.0078125
    %v451 = vmul.f32 %v148, 0.0078125
    %v452 = vmul.f32 %v150, 0.0078125
    %v453 = vmul.f32 %v152, 0.0078125
    %v454 = vmul.f32 %v154, 0.0078125
    %v455 = vmul.f32 %v156, 0.0078125
    %v456 = vmul.f32 %v158, 0.0078125
    %v457 = vmul.f32 %v160, 0.0078125
    %v458 = vmul.f32 %v162, 0.0078125
    %v459 = vmul.f32 %v164, 0.0078125
    %v460 = vmul.f32 %v166, 0.0078125
    %v461 = vmul.f32 %v168, 0.0078125
    %v462 = vmul.f32 %v170, 0.0078125
    %v463 = vmul.f32 %v172, 0.0078125
    %v464 = vmul.f32 %v174, 0.0078125
    %v465 = vmul.f32 %v176, 0.0078125
    %v466 = vmul.f32 %v178, 0.0078125
    %v467 = vmul.f32 %v180, 0.0078125
    %v468 = vmul.f32 %v182, 0.0078125
    %v469 = vmul.f32 %v184, 0.0078125
    %v470 = vmul.f32 %v186, 0.0078125
    %v471 = vmul.f32 %v188, 0.0078125
    %v472 = vmul.f32 %v190, 0.0078125
    %v473 = vmul.f32 %v192, 0.0078125
    %v474 = vmul.f32 %v194, 0.0078125
    %v475 = vmul.f32 %v196, 0.0078125
    %v476 = vmul.f32 %v198, 0.0078125
    %v477 = vmul.f32 %v200, 0.0078125
    %v478 = vmul.f32 %v202, 0.0078125
    %v479 = vmul.f32 %v204, 0.0078125
    %v480 = vmul.f32 %v206, 0.0078125
    %v481 = vmul.f32 %v208, 0.0078125
    %v482 = vmul.f32 %v210, 0.0078125
    %v483 = vmul.f32 %v212, 0.0078125
    %v484 = vmul.f32 %v214, 0.0078125
    %v485 = vmul.f32 %v216, 0.0078125
    %v486 = vmul.f32 %v218, 0.0078125
    %v487 = vmul.f32 %v220, 0.0078125
    %v488 = vmul.f32 %v222, 0.0078125
    %v489 = vmul.f32 %v224, 0.0078125
    %v490 = vmul.f32 %v226, 0.0078125
    %v491 = vmul.f32 %v228, 0.0078125
    %v492 = vmul.f32 %v230, 0.0078125
    %v493 = vmul.f32 %v232, 0.0078125
    %v494 = vmul.f32 %v234, 0.0078125
    %v495 = vmul.f32 %v236, 0.0078125
    %v496 = vmul.f32 %v238, 0.0078125
    %v497 = vmul.f32 %v240, 0.0078125
    %v498 = vmul.f32 %v242, 0.0078125
    %v499 = vmul.f32 %v308, 0.0078125
    %v500 = vmul.f32 %v310, 0.0078125
    %v501 = vmul.f32 %v312, 0.0078125
    %v502 = vmul.f32 %v314, 0.0078125
    %v503 = vmul.f32 %v316, 0.0078125
    %v504 = vmul.f32 %v318, 0.0078125
    %v505 = vmul.f32 %v320, 0.0078125
    %v506 = vmul.f32 %v322, 0.0078125
    %v507 = vmul.f32 %v324, 0.0078125
    %v508 = vmul.f32 %v326, 0.0078125
    %v509 = vmul.f32 %v328, 0.0078125
    %v510 = vmul.f32 %v330, 0.0078125
    %v511 = vmul.f32 %v332, 0.0078125
    %v512 = vmul.f32 %v334, 0.0078125
    %v513 = vmul.f32 %v336, 0.0078125
    %v514 = vmul.f32 %v338, 0.0078125
    %v515 = vmul.f32 %v340, 0.0078125
    %v516 = vmul.f32 %v342, 0.0078125
    %v517 = vmul.f32 %v344, 0.0078125
    %v518 = vmul.f32 %v346, 0.0078125
    %v519 = vmul.f32 %v348, 0.0078125
    %v520 = vmul.f32 %v350, 0.0078125
    %v521 = vmul.f32 %v352, 0.0078125
    %v522 = vmul.f32 %v354, 0.0078125
    %v523 = vmul.f32 %v356, 0.0078125
    %v524 = vmul.f32 %v358, 0.0078125
    %v525 = vmul.f32 %v360, 0.0078125
    %v526 = vmul.f32 %v362, 0.0078125
    %v527 = vmul.f32 %v364, 0.0078125
    %v528 = vmul.f32 %v366, 0.0078125
    %v529 = vmul.f32 %v368, 0.0078125
    %v530 = vmul.f32 %v370, 0.0078125
    %v531 = vmul.f32 %v372, 0.0078125
    %v532 = vmul.f32 %v374, 0.0078125
    %v533 = vmul.f32 %v376, 0.0078125
    %v534 = vmul.f32 %v378, 0.0078125
    %v535 = vmul.f32 %v380, 0.0078125
    %v536 = vmul.f32 %v382, 0.0078125
    %v537 = vmul.f32 %v384, 0.0078125
    %v538 = vmul.f32 %v386, 0.0078125
    %v539 = vmul.f32 %v388, 0.0078125
    %v540 = vmul.f32 %v390, 0.0078125
    %v541 = vmul.f32 %v392, 0.0078125
    %v542 = vmul.f32 %v394, 0.0078125
    %v543 = vmul.f32 %v396, 0.0078125
    %v544 = vmul.f32 %v398, 0.0078125
    %v545 = vmul.f32 %v400, 0.0078125
    %v546 = vmul.f32 %v402, 0.0078125
    %v547 = vmul.f32 %v404, 0.0078125
    %v548 = vmul.f32 %v406, 0.0078125
    %v549 = vmul.f32 %v408, 0.0078125
    %v550 = vmul.f32 %v410, 0.0078125
    %v551 = vmul.f32 %v412, 0.0078125
    %v552 = vmul.f32 %v414, 0.0078125
    %v553 = vmul.f32 %v416, 0.0078125
    %v554 = vmul.f32 %v418, 0.0078125
    %v555 = vmul.f32 %v420, 0.0078125
    %v556 = vmul.f32 %v422, 0.0078125
    %v557 = vmul.f32 %v424, 0.0078125
    %v558 = vmul.f32 %v426, 0.0078125
    %v559 = vmul.f32 %v428, 0.0078125
    %v560 = vmul.f32 %v430, 0.0078125
    %v561 = vmul.f32 %v432, 0.0078125
    %v562 = vmul.f32 %v434, 0.0078125
    %v563 = vmul.f32 %v435, %v435
    %v564 = vmul.f32 %v436, %v436
    %v565 = vmul.f32 %v437, %v437
    %v566 = vmul.f32 %v438, %v438
    %v567 = vmul.f32 %v439, %v439
    %v568 = vmul.f32 %v440, %v440
    %v569 = vmul.f32 %v441, %v441
    %v570 = vmul.f32 %v442, %v442
    %v571 = vmul.f32 %v443, %v443
    %v572 = vmul.f32 %v444, %v444
    %v573 = vmul.f32 %v445, %v445
    %v574 = vmul.f32 %v446, %v446
    %v575 = vmul.f32 %v447, %v447
    %v576 = vmul.f32 %v448, %v448
    %v577 = vmul.f32 %v449, %v449
    %v578 = vmul.f32 %v450, %v450
    %v579 = vmul.f32 %v451, %v451
    %v580 = vmul.f32 %v452, %v452
    %v581 = vmul.f32 %v453, %v453
    %v582 = vmul.f32 %v454, %v454
    %v583 = vmul.f32 %v455, %v455
    %v584 = vmul.f32 %v456, %v456
    %v585 = vmul.f32 %v457, %v457
    %v586 = vmul.f32 %v458, %v458
    %v587 = vmul.f32 %v459, %v459
    %v588 = vmul.f32 %v460, %v460
    %v589 = vmul.f32 %v461, %v461
    %v590 = vmul.f32 %v462, %v462
    %v591 = vmul.f32 %v463, %v463
    %v592 = vmul.f32 %v464, %v464
    %v593 = vmul.f32 %v465, %v465
    %v594 = vmul.f32 %v466, %v466
    %v595 = vmul.f32 %v467, %v467
    %v596 = vmul.f32 %v468, %v468
    %v597 = vmul.f32 %v469, %v469
    %v598 = vmul.f32 %v470, %v470
    %v599 = vmul.f32 %v471, %v471
    %v600 = vmul.f32 %v472, %v472
    %v601 = vmul.f32 %v473, %v473
    %v602 = vmul.f32 %v474, %v474
    %v603 = vmul.f32 %v475, %v475
    %v604 = vmul.f32 %v476, %v476
    %v605 = vmul.f32 %v477, %v477
    %v606 = vmul.f32 %v478, %v478
    %v607 = vmul.f32 %v479, %v479
    %v608 = vmul.f32 %v480, %v480
    %v609 = vmul.f32 %v481, %v481
    %v610 = vmul.f32 %v482, %v482
    %v611 = vmul.f32 %v483, %v483
    %v612 = vmul.f32 %v484, %v484
    %v613 = vmul.f32 %v485, %v485
    %v614 = vmul.f32 %v486, %v486
    %v615 = vmul.f32 %v487, %v487
    %v616 = vmul.f32 %v488, %v488
    %v617 = vmul.f32 %v489, %v489
    %v618 = vmul.f32 %v490, %v490
    %v619 = vmul.f32 %v491, %v491
    %v620 = vmul.f32 %v492, %v492
    %v621 = vmul.f32 %v493, %v493
    %v622 = vmul.f32 %v494, %v494
    %v623 = vmul.f32 %v495, %v495
    %v624 = vmul.f32 %v496, %v496
    %v625 = vmul.f32 %v497, %v497
    %v626 = vmul.f32 %v498, %v498
    %v627 = vsub.f32 %v499, %v563
    %v628 = vsub.f32 %v500, %v564
    %v629 = vsub.f32 %v501, %v565
    %v630 = vsub.f32 %v502, %v566
    %v631 = vsub.f32 %v503, %v567
    %v632 = vsub.f32 %v504, %v568
    %v633 = vsub.f32 %v505, %v569
    %v634 = vsub.f32 %v506, %v570
    %v635 = vsub.f32 %v507, %v571
    %v636 = vsub.f32 %v508, %v572
    %v637 = vsub.f32 %v509, %v573
    %v638 = vsub.f32 %v510, %v574
    %v639 = vsub.f32 %v511, %v575
    %v640 = vsub.f32 %v512, %v576
    %v641 = vsub.f32 %v513, %v577
    %v642 = vsub.f32 %v514, %v578
    %v643 = vsub.f32 %v515, %v579
    %v644 = vsub.f32 %v516, %v580
    %v645 = vsub.f32 %v517, %v581
    %v646 = vsub.f32 %v518, %v582
    %v647 = vsub.f32 %v519, %v583
    %v648 = vsub.f32 %v520, %v584
    %v649 = vsub.f32 %v521, %v585
    %v650 = vsub.f32 %v522, %v586
    %v651 = vsub.f32 %v523, %v587
    %v652 = vsub.f32 %v524, %v588
    %v653 = vsub.f32 %v525, %v589
    %v654 = vsub.f32 %v526, %v590
    %v655 = vsub.f32 %v527, %v591
    %v656 = vsub.f32 %v528, %v592
    %v657 = vsub.f32 %v529, %v593
    %v658 = vsub.f32 %v530, %v594
    %v659 = vsub.f32 %v531, %v595
    %v660 = vsub.f32 %v532, %v596
    %v661 = vsub.f32 %v533, %v597
    %v662 = vsub.f32 %v534, %v598
    %v663 = vsub.f32 %v535, %v599
    %v664 = vsub.f32 %v536, %v600
    %v665 = vsub.f32 %v537, %v601
    %v666 = vsub.f32 %v538, %v602
    %v667 = vsub.f32 %v539, %v603
    %v668 = vsub.f32 %v540, %v604
    %v669 = vsub.f32 %v541, %v605
    %v670 = vsub.f32 %v542, %v606
    %v671 = vsub.f32 %v543, %v607
    %v672 = vsub.f32 %v544, %v608
    %v673 = vsub.f32 %v545, %v609
    %v674 = vsub.f32 %v546, %v610
    %v675 = vsub.f32 %v547, %v611
    %v676 = vsub.f32 %v548, %v612
    %v677 = vsub.f32 %v549, %v613
    %v678 = vsub.f32 %v550, %v614
    %v679 = vsub.f32 %v551, %v615
    %v680 = vsub.f32 %v552, %v616
    %v681 = vsub.f32 %v553, %v617
    %v682 = vsub.f32 %v554, %v618
    %v683 = vsub.f32 %v555, %v619
    %v684 = vsub.f32 %v556, %v620
    %v685 = vsub.f32 %v557, %v621
    %v686 = vsub.f32 %v558, %v622
    %v687 = vsub.f32 %v559, %v623
    %v688 = vsub.f32 %v560, %v624
    %v689 = vsub.f32 %v561, %v625
    %v690 = vsub.f32 %v562, %v626
    %v691 = vadd.f32 %v627, 1e-05
    %v692 = vadd.f32 %v628, 1e-05
    %v693 = vadd.f32 %v629, 1e-05
    %v694 = vadd.f32 %v630, 1e-05
    %v695 = vadd.f32 %v631, 1e-05
    %v696 = vadd.f32 %v632, 1e-05
    %v697 = vadd.f32 %v633, 1e-05
    %v698 = vadd.f32 %v634, 1e-05
    %v699 = vadd.f32 %v635, 1e-05
    %v700 = vadd.f32 %v636, 1e-05
    %v701 = vadd.f32 %v637, 1e-05
    %v702 = vadd.f32 %v638, 1e-05
    %v703 = vadd.f32 %v639, 1e-05
    %v704 = vadd.f32 %v640, 1e-05
    %v705 = vadd.f32 %v641, 1e-05
    %v706 = vadd.f32 %v642, 1e-05
    %v707 = vadd.f32 %v643, 1e-05
    %v708 = vadd.f32 %v644, 1e-05
    %v709 = vadd.f32 %v645, 1e-05
    %v710 = vadd.f32 %v646, 1e-05
    %v711 = vadd.f32 %v647, 1e-05
    %v712 = vadd.f32 %v648, 1e-05
    %v713 = vadd.f32 %v649, 1e-05
    %v714 = vadd.f32 %v650, 1e-05
    %v715 = vadd.f32 %v651, 1e-05
    %v716 = vadd.f32 %v652, 1e-05
    %v717 = vadd.f32 %v653, 1e-05
    %v718 = vadd.f32 %v654, 1e-05
    %v719 = vadd.f32 %v655, 1e-05
    %v720 = vadd.f32 %v656, 1e-05
    %v721 = vadd.f32 %v657, 1e-05
    %v722 = vadd.f32 %v658, 1e-05
    %v723 = vadd.f32 %v659, 1e-05
    %v724 = vadd.f32 %v660, 1e-05
    %v725 = vadd.f32 %v661, 1e-05
    %v726 = vadd.f32 %v662, 1e-05
    %v727 = vadd.f32 %v663, 1e-05
    %v728 = vadd.f32 %v664, 1e-05
    %v729 = vadd.f32 %v665, 1e-05
    %v730 = vadd.f32 %v666, 1e-05
    %v731 = vadd.f32 %v667, 1e-05
    %v732 = vadd.f32 %v668, 1e-05
    %v733 = vadd.f32 %v669, 1e-05
    %v734 = vadd.f32 %v670, 1e-05
    %v735 = vadd.f32 %v671, 1e-05
    %v736 = vadd.f32 %v672, 1e-05
    %v737 = vadd.f32 %v673, 1e-05
    %v738 = vadd.f32 %v674, 1e-05
    %v739 = vadd.f32 %v675, 1e-05
    %v740 = vadd.f32 %v676, 1e-05
    %v741 = vadd.f32 %v677, 1e-05
    %v742 = vadd.f32 %v678, 1e-05
    %v743 = vadd.f32 %v679, 1e-05
    %v744 = vadd.f32 %v680, 1e-05
    %v745 = vadd.f32 %v681, 1e-05
    %v746 = vadd.f32 %v682, 1e-05
    %v747 = vadd.f32 %v683, 1e-05
    %v748 = vadd.f32 %v684, 1e-05
    %v749 = vadd.f32 %v685, 1e-05
    %v750 = vadd.f32 %v686, 1e-05
    %v751 = vadd.f32 %v687, 1e-05
    %v752 = vadd.f32 %v688, 1e-05
    %v753 = vadd.f32 %v689, 1e-05
    %v754 = vadd.f32 %v690, 1e-05
    %v755 = vrsqrt.pop %v691
    %v756 = vrsqrt.pop %v692
    %v757 = vrsqrt.pop %v693
    %v758 = vrsqrt.pop %v694
    %v759 = vrsqrt.pop %v695
    %v760 = vrsqrt.pop %v696
    %v761 = vrsqrt.pop %v697
    %v762 = vrsqrt.pop %v698
    %v763 = vrsqrt.pop %v699
    %v764 = vrsqrt.pop %v700
    %v765 = vrsqrt.pop %v701
    %v766 = vrsqrt.pop %v702
    %v767 = vrsqrt.pop %v703
    %v768 = vrsqrt.pop %v704
    %v769 = vrsqrt.pop %v705
    %v770 = vrsqrt.pop %v706
    %v771 = vrsqrt.pop %v707
    %v772 = vrsqrt.pop %v708
    %v773 = vrsqrt.pop %v709
    %v774 = vrsqrt.pop %v710
    %v775 = vrsqrt.pop %v711
    %v776 = vrsqrt.pop %v712
    %v777 = vrsqrt.pop %v713
    %v778 = vrsqrt.pop %v714
    %v779 = vrsqrt.pop %v715
    %v780 = vrsqrt.pop %v716
    %v781 = vrsqrt.pop %v717
    %v782 = vrsqrt.pop %v718
    %v783 = vrsqrt.pop %v719
    %v784 = vrsqrt.pop %v720
    %v785 = vrsqrt.pop %v721
    %v786 = vrsqrt.pop %v722
    %v787 = vrsqrt.pop %v723
    %v788 = vrsqrt.pop %v724
    %v789 = vrsqrt.pop %v725
    %v790 = vrsqrt.pop %v726
    %v791 = vrsqrt.pop %v727
    %v792 = vrsqrt.pop %v728
    %v793 = vrsqrt.pop %v729
    %v794 = vrsqrt.pop %v730
    %v795 = vrsqrt.pop %v731
    %v796 = vrsqrt.pop %v732
    %v797 = vrsqrt.pop %v733
    %v798 = vrsqrt.pop %v734
    %v799 = vrsqrt.pop %v735
    %v800 = vrsqrt.pop %v736
    %v801 = vrsqrt.pop %v737
    %v802 = vrsqrt.pop %v738
    %v803 = vrsqrt.pop %v739
    %v804 = vrsqrt.pop %v740
    %v805 = vrsqrt.pop %v741
    %v806 = vrsqrt.pop %v742
    %v807 = vrsqrt.pop %v743
    %v808 = vrsqrt.pop %v744
    %v809 = vrsqrt.pop %v745
    %v810 = vrsqrt.pop %v746
    %v811 = vrsqrt.pop %v747
    %v812 = vrsqrt.pop %v748
    %v813 = vrsqrt.pop %v749
    %v814 = vrsqrt.pop %v750
    %v815 = vrsqrt.pop %v751
    %v816 = vrsqrt.pop %v752
    %v817 = vrsqrt.pop %v753
    %v818 = vrsqrt.pop %v754
    %v819 = vsub.f32 %v50, %v435
    %v820 = vsub.f32 %v51, %v436
    %v821 = vsub.f32 %v52, %v437
    %v822 = vsub.f32 %v53, %v438
    %v823 = vsub.f32 %v54, %v439
    %v824 = vsub.f32 %v55, %v440
    %v825 = vsub.f32 %v56, %v441
    %v826 = vsub.f32 %v57, %v442
    %v827 = vsub.f32 %v58, %v443
    %v828 = vsub.f32 %v59, %v444
    %v829 = vsub.f32 %v60, %v445
    %v830 = vsub.f32 %v61, %v446
    %v831 = vsub.f32 %v62, %v447
    %v832 = vsub.f32 %v63, %v448
    %v833 = vsub.f32 %v64, %v449
    %v834 = vsub.f32 %v65, %v450
    %v835 = vsub.f32 %v66, %v451
    %v836 = vsub.f32 %v67, %v452
    %v837 = vsub.f32 %v68, %v453
    %v838 = vsub.f32 %v69, %v454
    %v839 = vsub.f32 %v70, %v455
    %v840 = vsub.f32 %v71, %v456
    %v841 = vsub.f32 %v72, %v457
    %v842 = vsub.f32 %v73, %v458
    %v843 = vsub.f32 %v74, %v459
    %v844 = vsub.f32 %v75, %v460
    %v845 = vsub.f32 %v76, %v461
    %v846 = vsub.f32 %v77, %v462
    %v847 = vsub.f32 %v78, %v463
    %v848 = vsub.f32 %v79, %v464
    %v849 = vsub.f32 %v80, %v465
    %v850 = vsub.f32 %v81, %v466
    %v851 = vsub.f32 %v82, %v467
    %v852 = vsub.f32 %v83, %v468
    %v853 = vsub.f32 %v84, %v469
    %v854 = vsub.f32 %v85, %v470
    %v855 = vsub.f32 %v86, %v471
    %v856 = vsub.f32 %v87, %v472
    %v857 = vsub.f32 %v88, %v473
    %v858 = vsub.f32 %v89, %v474
    %v859 = vsub.f32 %v90, %v475
    %v860 = vsub.f32 %v91, %v476
    %v861 = vsub.f32 %v92, %v477
    %v862 = vsub.f32 %v93, %v478
    %v863 = vsub.f32 %v94, %v479
    %v864 = vsub.f32 %v95, %v480
    %v865 = vsub.f32 %v96, %v481
    %v866 = vsub.f32 %v97, %v482
    %v867 = vsub.f32 %v98, %v483
    %v868 = vsub.f32 %v99, %v484
    %v869 = vsub.f32 %v100, %v485
    %v870 = vsub.f32 %v101, %v486
    %v871 = vsub.f32 %v102, %v487
    %v872 = vsub.f32 %v103, %v488
    %v873 = vsub.f32 %v104, %v489
    %v874 = vsub.f32 %v105, %v490
    %v875 = vsub.f32 %v106, %v491
    %v876 = vsub.f32 %v107, %v492
    %v877 = vsub.f32 %v108, %v493
    %v878 = vsub.f32 %v109, %v494
    %v879 = vsub.f32 %v110, %v495
    %v880 = vsub.f32 %v111, %v496
    %v881 = vsub.f32 %v112, %v497
    %v882 = vsub.f32 %v113, %v498
    %v883 = vmul.f32 %v819, %v755
    %v884 = vmul.f32 %v820, %v756
    %v885 = vmul.f32 %v821, %v757
    %v886 = vmul.f32 %v822, %v758
    %v887 = vmul.f32 %v823, %v759
    %v888 = vmul.f32 %v824, %v760
    %v889 = vmul.f32 %v825, %v761
    %v890 = vmul.f32 %v826, %v762
    %v891 = vmul.f32 %v827, %v763
    %v892 = vmul.f32 %v828, %v764
    %v893 = vmul.f32 %v829, %v765
    %v894 = vmul.f32 %v830, %v766
    %v895 = vmul.f32 %v831, %v767
    %v896 = vmul.f32 %v832, %v768
    %v897 = vmul.f32 %v833, %v769
    %v898 = vmul.f32 %v834, %v770
    %v899 = vmul.f32 %v835, %v771
    %v900 = vmul.f32 %v836, %v772
    %v901 = vmul.f32 %v837, %v773
    %v902 = vmul.f32 %v838, %v774
    %v903 = vmul.f32 %v839, %v775
    %v904 = vmul.f32 %v840, %v776
    %v905 = vmul.f32 %v841, %v777
    %v906 = vmul.f32 %v842, %v778
    %v907 = vmul.f32 %v843, %v779
    %v908 = vmul.f32 %v844, %v780
    %v909 = vmul.f32 %v845, %v781
    %v910 = vmul.f32 %v846, %v782
    %v911 = vmul.f32 %v847, %v783
    %v912 = vmul.f32 %v848, %v784
    %v913 = vmul.f32 %v849, %v785
    %v914 = vmul.f32 %v850, %v786
    %v915 = vmul.f32 %v851, %v787
    %v916 = vmul.f32 %v852, %v788
    %v917 = vmul.f32 %v853, %v789
    %v918 = vmul.f32 %v854, %v790
    %v919 = vmul.f32 %v855, %v791
    %v920 = vmul.f32 %v856, %v792
    %v921 = vmul.f32 %v857, %v793
    %v922 = vmul.f32 %v858, %v794
    %v923 = vmul.f32 %v859, %v795
    %v924 = vmul.f32 %v860, %v796
    %v925 = vmul.f32 %v861, %v797
    %v926 = vmul.f32 %v862, %v798
    %v927 = vmul.f32 %v863, %v799
    %v928 = vmul.f32 %v864, %v800
    %v929 = vmul.f32 %v865, %v801
    %v930 = vmul.f32 %v866, %v802
    %v931 = vmul.f32 %v867, %v803
    %v932 = vmul.f32 %v868, %v804
    %v933 = vmul.f32 %v869, %v805
    %v934 = vmul.f32 %v870, %v806
    %v935 = vmul.f32 %v871, %v807
    %v936 = vmul.f32 %v872, %v808
    %v937 = vmul.f32 %v873, %v809
    %v938 = vmul.f32 %v874, %v810
    %v939 = vmul.f32 %v875, %v811
    %v940 = vmul.f32 %v876, %v812
    %v941 = vmul.f32 %v877, %v813
    %v942 = vmul.f32 %v878, %v814
    %v943 = vmul.f32 %v879, %v815
    %v944 = vmul.f32 %v880, %v816
    %v945 = vmul.f32 %v881, %v817
    %v946 = vmul.f32 %v882, %v818
    %v947 = vld [vmem:[%s3] sm:$0x1]
    %v949 = vlaneseq
    %v950 = vshrl.u32 %v949, 7
    %v951 = vsub.s32 0, %v950
    %v952 = vrot.slane %v947, %v951
    %v954 = vmul.f32 %v883, %v952
    %v955 = vmul.f32 %v884, %v952
    %v956 = vmul.f32 %v885, %v952
    %v957 = vmul.f32 %v886, %v952
    %v958 = vmul.f32 %v887, %v952
    %v959 = vmul.f32 %v888, %v952
    %v960 = vmul.f32 %v889, %v952
    %v961 = vmul.f32 %v890, %v952
    %v962 = vmul.f32 %v891, %v952
    %v963 = vmul.f32 %v892, %v952
    %v964 = vmul.f32 %v893, %v952
    %v965 = vmul.f32 %v894, %v952
    %v966 = vmul.f32 %v895, %v952
    %v967 = vmul.f32 %v896, %v952
    %v968 = vmul.f32 %v897, %v952
    %v969 = vmul.f32 %v898, %v952
    %v970 = vmul.f32 %v899, %v952
    %v971 = vmul.f32 %v900, %v952
    %v972 = vmul.f32 %v901, %v952
    %v973 = vmul.f32 %v902, %v952
    %v974 = vmul.f32 %v903, %v952
    %v975 = vmul.f32 %v904, %v952
    %v976 = vmul.f32 %v905, %v952
    %v977 = vmul.f32 %v906, %v952
    %v978 = vmul.f32 %v907, %v952
    %v979 = vmul.f32 %v908, %v952
    %v980 = vmul.f32 %v909, %v952
    %v981 = vmul.f32 %v910, %v952
    %v982 = vmul.f32 %v911, %v952
    %v983 = vmul.f32 %v912, %v952
    %v984 = vmul.f32 %v913, %v952
    %v985 = vmul.f32 %v914, %v952
    %v986 = vmul.f32 %v915, %v952
    %v987 = vmul.f32 %v916, %v952
    %v988 = vmul.f32 %v917, %v952
    %v989 = vmul.f32 %v918, %v952
    %v990 = vmul.f32 %v919, %v952
    %v991 = vmul.f32 %v920, %v952
    %v992 = vmul.f32 %v921, %v952
    %v993 = vmul.f32 %v922, %v952
    %v994 = vmul.f32 %v923, %v952
    %v995 = vmul.f32 %v924, %v952
    %v996 = vmul.f32 %v925, %v952
    %v997 = vmul.f32 %v926, %v952
    %v998 = vmul.f32 %v927, %v952
    %v999 = vmul.f32 %v928, %v952
    %v1000 = vmul.f32 %v929, %v952
    %v1001 = vmul.f32 %v930, %v952
    %v1002 = vmul.f32 %v931, %v952
    %v1003 = vmul.f32 %v932, %v952
    %v1004 = vmul.f32 %v933, %v952
    %v1005 = vmul.f32 %v934, %v952
    %v1006 = vmul.f32 %v935, %v952
    %v1007 = vmul.f32 %v936, %v952
    %v1008 = vmul.f32 %v937, %v952
    %v1009 = vmul.f32 %v938, %v952
    %v1010 = vmul.f32 %v939, %v952
    %v1011 = vmul.f32 %v940, %v952
    %v1012 = vmul.f32 %v941, %v952
    %v1013 = vmul.f32 %v942, %v952
    %v1014 = vmul.f32 %v943, %v952
    %v1015 = vmul.f32 %v944, %v952
    %v1016 = vmul.f32 %v945, %v952
    %v1017 = vmul.f32 %v946, %v952
    %v1018 = vld [vmem:[%s4] sm:$0x1]
    %v1020 = vlaneseq
    %v1021 = vshrl.u32 %v1020, 7
    %v1022 = vsub.s32 0, %v1021
    %v1023 = vrot.slane %v1018, %v1022
    %v1025 = vadd.f32 %v954, %v1023
    %v1026 = vadd.f32 %v955, %v1023
    %v1027 = vadd.f32 %v956, %v1023
    %v1028 = vadd.f32 %v957, %v1023
    %v1029 = vadd.f32 %v958, %v1023
    %v1030 = vadd.f32 %v959, %v1023
    %v1031 = vadd.f32 %v960, %v1023
    %v1032 = vadd.f32 %v961, %v1023
    %v1033 = vadd.f32 %v962, %v1023
    %v1034 = vadd.f32 %v963, %v1023
    %v1035 = vadd.f32 %v964, %v1023
    %v1036 = vadd.f32 %v965, %v1023
    %v1037 = vadd.f32 %v966, %v1023
    %v1038 = vadd.f32 %v967, %v1023
    %v1039 = vadd.f32 %v968, %v1023
    %v1040 = vadd.f32 %v969, %v1023
    %v1041 = vadd.f32 %v970, %v1023
    %v1042 = vadd.f32 %v971, %v1023
    %v1043 = vadd.f32 %v972, %v1023
    %v1044 = vadd.f32 %v973, %v1023
    %v1045 = vadd.f32 %v974, %v1023
    %v1046 = vadd.f32 %v975, %v1023
    %v1047 = vadd.f32 %v976, %v1023
    %v1048 = vadd.f32 %v977, %v1023
    %v1049 = vadd.f32 %v978, %v1023
    %v1050 = vadd.f32 %v979, %v1023
    %v1051 = vadd.f32 %v980, %v1023
    %v1052 = vadd.f32 %v981, %v1023
    %v1053 = vadd.f32 %v982, %v1023
    %v1054 = vadd.f32 %v983, %v1023
    %v1055 = vadd.f32 %v984, %v1023
    %v1056 = vadd.f32 %v985, %v1023
    %v1057 = vadd.f32 %v986, %v1023
    %v1058 = vadd.f32 %v987, %v1023
    %v1059 = vadd.f32 %v988, %v1023
    %v1060 = vadd.f32 %v989, %v1023
    %v1061 = vadd.f32 %v990, %v1023
    %v1062 = vadd.f32 %v991, %v1023
    %v1063 = vadd.f32 %v992, %v1023
    %v1064 = vadd.f32 %v993, %v1023
    %v1065 = vadd.f32 %v994, %v1023
    %v1066 = vadd.f32 %v995, %v1023
    %v1067 = vadd.f32 %v996, %v1023
    %v1068 = vadd.f32 %v997, %v1023
    %v1069 = vadd.f32 %v998, %v1023
    %v1070 = vadd.f32 %v999, %v1023
    %v1071 = vadd.f32 %v1000, %v1023
    %v1072 = vadd.f32 %v1001, %v1023
    %v1073 = vadd.f32 %v1002, %v1023
    %v1074 = vadd.f32 %v1003, %v1023
    %v1075 = vadd.f32 %v1004, %v1023
    %v1076 = vadd.f32 %v1005, %v1023
    %v1077 = vadd.f32 %v1006, %v1023
    %v1078 = vadd.f32 %v1007, %v1023
    %v1079 = vadd.f32 %v1008, %v1023
    %v1080 = vadd.f32 %v1009, %v1023
    %v1081 = vadd.f32 %v1010, %v1023
    %v1082 = vadd.f32 %v1011, %v1023
    %v1083 = vadd.f32 %v1012, %v1023
    %v1084 = vadd.f32 %v1013, %v1023
    %v1085 = vadd.f32 %v1014, %v1023
    %v1086 = vadd.f32 %v1015, %v1023
    %v1087 = vadd.f32 %v1016, %v1023
    %v1088 = vadd.f32 %v1017, %v1023
    %v1089 = vpack.c.bf16 %v1026, %v1025
    %v1090 = vpack.c.bf16 %v1028, %v1027
    %v1091 = vpack.c.bf16 %v1030, %v1029
    %v1092 = vpack.c.bf16 %v1032, %v1031
    %v1093 = vpack.c.bf16 %v1034, %v1033
    %v1094 = vpack.c.bf16 %v1036, %v1035
    %v1095 = vpack.c.bf16 %v1038, %v1037
    %v1096 = vpack.c.bf16 %v1040, %v1039
    %v1097 = vpack.c.bf16 %v1042, %v1041
    %v1098 = vpack.c.bf16 %v1044, %v1043
    %v1099 = vpack.c.bf16 %v1046, %v1045
    %v1100 = vpack.c.bf16 %v1048, %v1047
    %v1101 = vpack.c.bf16 %v1050, %v1049
    %v1102 = vpack.c.bf16 %v1052, %v1051
    %v1103 = vpack.c.bf16 %v1054, %v1053
    %v1104 = vpack.c.bf16 %v1056, %v1055
    %v1105 = vpack.c.bf16 %v1058, %v1057
    %v1106 = vpack.c.bf16 %v1060, %v1059
    %v1107 = vpack.c.bf16 %v1062, %v1061
    %v1108 = vpack.c.bf16 %v1064, %v1063
    %v1109 = vpack.c.bf16 %v1066, %v1065
    %v1110 = vpack.c.bf16 %v1068, %v1067
    %v1111 = vpack.c.bf16 %v1070, %v1069
    %v1112 = vpack.c.bf16 %v1072, %v1071
    %v1113 = vpack.c.bf16 %v1074, %v1073
    %v1114 = vpack.c.bf16 %v1076, %v1075
    %v1115 = vpack.c.bf16 %v1078, %v1077
    %v1116 = vpack.c.bf16 %v1080, %v1079
    %v1117 = vpack.c.bf16 %v1082, %v1081
    %v1118 = vpack.c.bf16 %v1084, %v1083
    %v1119 = vpack.c.bf16 %v1086, %v1085
    %v1120 = vpack.c.bf16 %v1088, %v1087
    %v1121 = vld [vmem:[#allocation5] sm:$0xf]
    %v1122 = vld [vmem:[#allocation5 + $0x4] sm:$0xf]
    %v1123 = vld [vmem:[#allocation5 + $0x8] sm:$0xf]
    %v1124 = vld [vmem:[#allocation5 + $0xc] sm:$0xf]
    %v1125 = vld [vmem:[#allocation5 + $0x10] sm:$0xf]
    %v1126 = vld [vmem:[#allocation5 + $0x14] sm:$0xf]
    %v1127 = vld [vmem:[#allocation5 + $0x18] sm:$0xf]
    %v1128 = vld [vmem:[#allocation5 + $0x1c] sm:$0xf]
    %v1129 = vld [vmem:[#allocation5 + $0x20] sm:$0xf]
    %v1130 = vld [vmem:[#allocation5 + $0x24] sm:$0xf]
    %v1131 = vld [vmem:[#allocation5 + $0x28] sm:$0xf]
    %v1132 = vld [vmem:[#allocation5 + $0x2c] sm:$0xf]
    %v1133 = vld [vmem:[#allocation5 + $0x30] sm:$0xf]
    %v1134 = vld [vmem:[#allocation5 + $0x34] sm:$0xf]
    %v1135 = vld [vmem:[#allocation5 + $0x38] sm:$0xf]
    %v1136 = vld [vmem:[#allocation5 + $0x3c] sm:$0xf]
    %v1153 = vunpack.c.l.b16 %v1121
    %v1154 = vunpack.c.l.b16 %v1122
    %v1155 = vunpack.c.l.b16 %v1123
    %v1156 = vunpack.c.l.b16 %v1124
    %v1157 = vunpack.c.l.b16 %v1125
    %v1158 = vunpack.c.l.b16 %v1126
    %v1159 = vunpack.c.l.b16 %v1127
    %v1160 = vunpack.c.l.b16 %v1128
    %v1161 = vunpack.c.l.b16 %v1129
    %v1162 = vunpack.c.l.b16 %v1130
    %v1163 = vunpack.c.l.b16 %v1131
    %v1164 = vunpack.c.l.b16 %v1132
    %v1165 = vunpack.c.l.b16 %v1133
    %v1166 = vunpack.c.l.b16 %v1134
    %v1167 = vunpack.c.l.b16 %v1135
    %v1168 = vunpack.c.l.b16 %v1136
    %v1169 = vpack.c.b16 %v1154, %v1153
    %v1170 = vpack.c.b16 %v1156, %v1155
    %v1171 = vpack.c.b16 %v1158, %v1157
    %v1172 = vpack.c.b16 %v1160, %v1159
    %v1173 = vpack.c.b16 %v1162, %v1161
    %v1174 = vpack.c.b16 %v1164, %v1163
    %v1175 = vpack.c.b16 %v1166, %v1165
    %v1176 = vpack.c.b16 %v1168, %v1167
    %1185 = vmatprep.subr.bf16.mxu0 0
    %1186 = vmatpush1.bf16.msra.mxu0 %v1169
    %1187 = vmatprep.subr.bf16.mxu0 0
    %1188 = vmatpush1.bf16.msra.mxu0 %v1170
    %1189 = vmatprep.subr.bf16.mxu0 0
    %1190 = vmatpush1.bf16.msra.mxu0 %v1171
    %1191 = vmatprep.subr.bf16.mxu0 0
    %1192 = vmatpush1.bf16.msra.mxu0 %v1172
    %1193 = vmatprep.subr.bf16.mxu0 0
    %1194 = vmatpush1.bf16.msra.mxu0 %v1173
    %1195 = vmatprep.subr.bf16.mxu0 0
    %1196 = vmatpush1.bf16.msra.mxu0 %v1174
    %1197 = vmatprep.subr.bf16.mxu0 0
    %1198 = vmatpush1.bf16.msra.mxu0 %v1175
    %1199 = vmatprep.subr.bf16.mxu0 0
    %1200 = vmatpush1.bf16.msra.mxu0 %v1176
    %1201 = vmatprep.subr.bf16.mxu0 0
    %1202 = vmatpush1.bf16.msra.mxu0 0
    %1203 = vmatprep.subr.bf16.mxu0 0
    %1204 = vmatpush1.bf16.msra.mxu0 0
    %1205 = vmatprep.subr.bf16.mxu0 0
    %1206 = vmatpush1.bf16.msra.mxu0 0
    %1207 = vmatprep.subr.bf16.mxu0 0
    %1208 = vmatpush1.bf16.msra.mxu0 0
    %1209 = vmatprep.subr.bf16.mxu0 0
    %1210 = vmatpush1.bf16.msra.mxu0 0
    %1211 = vmatprep.subr.bf16.mxu0 0
    %1212 = vmatpush1.bf16.msra.mxu0 0
    %1213 = vmatprep.subr.bf16.mxu0 0
    %1214 = vmatpush1.bf16.msra.mxu0 0
    %1215 = vmatprep.subr.bf16.mxu0 0
    %1216 = vmatpush1.bf16.msra.mxu0 0
    %1217 = vmatprep.mubr.bf16.mxu0 0
    %1218 = vmatmul.mubr.bf16.gmra.mrb[0].mxu0 %v1089
    %v1219 = vpop.f32.mrb[0].mxu0
    %v1220 = vadd.f32 0.0, %v1219
    %v1221 = vpop.f32.mrb[0].mxu0
    %v1222 = vpop.f32.mrb[0].mxu0
    %v1223 = vadd.f32 0.0, %v1222
    %v1224 = vpop.f32.mrb[0].mxu0
    %1225 = vmatprep.mubr.bf16.mxu0 0
    %1226 = vmatmul.mubr.bf16.gmra.mrb[0].mxu0 %v1090
    %v1227 = vpop.f32.mrb[0].mxu0
    %v1228 = vadd.f32 0.0, %v1227
    %v1229 = vpop.f32.mrb[0].mxu0
    %v1230 = vpop.f32.mrb[0].mxu0
    %v1231 = vadd.f32 0.0, %v1230
    %v1232 = vpop.f32.mrb[0].mxu0
    %1233 = vmatprep.mubr.bf16.mxu0 0
    %1234 = vmatmul.mubr.bf16.gmra.mrb[0].mxu0 %v1091
    %v1235 = vpop.f32.mrb[0].mxu0
    %v1236 = vadd.f32 0.0, %v1235
    %v1237 = vpop.f32.mrb[0].mxu0
    %v1238 = vpop.f32.mrb[0].mxu0
    %v1239 = vadd.f32 0.0, %v1238
    %v1240 = vpop.f32.mrb[0].mxu0
    %1241 = vmatprep.mubr.bf16.mxu0 0
    %1242 = vmatmul.mubr.bf16.gmra.mrb[0].mxu0 %v1092
    %v1243 = vpop.f32.mrb[0].mxu0
    %v1244 = vadd.f32 0.0, %v1243
    %v1245 = vpop.f32.mrb[0].mxu0
    %v1246 = vpop.f32.mrb[0].mxu0
    %v1247 = vadd.f32 0.0, %v1246
    %v1248 = vpop.f32.mrb[0].mxu0
    %1249 = vmatprep.mubr.bf16.mxu0 0
    %1250 = vmatmul.mubr.bf16.gmra.mrb[0].mxu0 %v1093
    %v1251 = vpop.f32.mrb[0].mxu0
    %v1252 = vadd.f32 0.0, %v1251
    %v1253 = vpop.f32.mrb[0].mxu0
    %v1254 = vpop.f32.mrb[0].mxu0
    %v1255 = vadd.f32 0.0, %v1254
    %v1256 = vpop.f32.mrb[0].mxu0
    %1257 = vmatprep.mubr.bf16.mxu0 0
    %1258 = vmatmul.mubr.bf16.gmra.mrb[0].mxu0 %v1094
    %v1259 = vpop.f32.mrb[0].mxu0
    %v1260 = vadd.f32 0.0, %v1259
    %v1261 = vpop.f32.mrb[0].mxu0
    %v1262 = vpop.f32.mrb[0].mxu0
    %v1263 = vadd.f32 0.0, %v1262
    %v1264 = vpop.f32.mrb[0].mxu0
    %1265 = vmatprep.mubr.bf16.mxu0 0
    %1266 = vmatmul.mubr.bf16.gmra.mrb[0].mxu0 %v1095
    %v1267 = vpop.f32.mrb[0].mxu0
    %v1268 = vadd.f32 0.0, %v1267
    %v1269 = vpop.f32.mrb[0].mxu0
    %v1270 = vpop.f32.mrb[0].mxu0
    %v1271 = vadd.f32 0.0, %v1270
    %v1272 = vpop.f32.mrb[0].mxu0
    %1273 = vmatprep.mubr.bf16.mxu0 0
    %1274 = vmatmul.mubr.bf16.gmra.mrb[0].mxu0 %v1096
    %v1275 = vpop.f32.mrb[0].mxu0
    %v1276 = vadd.f32 0.0, %v1275
    %v1277 = vpop.f32.mrb[0].mxu0
    %v1278 = vpop.f32.mrb[0].mxu0
    %v1279 = vadd.f32 0.0, %v1278
    %v1280 = vpop.f32.mrb[0].mxu0
    %1281 = vmatprep.mubr.bf16.mxu0 0
    %1282 = vmatmul.mubr.bf16.gmra.mrb[0].mxu0 %v1097
    %v1283 = vpop.f32.mrb[0].mxu0
    %v1284 = vadd.f32 0.0, %v1283
    %v1285 = vpop.f32.mrb[0].mxu0
    %v1286 = vpop.f32.mrb[0].mxu0
    %v1287 = vadd.f32 0.0, %v1286
    %v1288 = vpop.f32.mrb[0].mxu0
    %1289 = vmatprep.mubr.bf16.mxu0 0
    %1290 = vmatmul.mubr.bf16.gmra.mrb[0].mxu0 %v1098
    %v1291 = vpop.f32.mrb[0].mxu0
    %v1292 = vadd.f32 0.0, %v1291
    %v1293 = vpop.f32.mrb[0].mxu0
    %v1294 = vpop.f32.mrb[0].mxu0
    %v1295 = vadd.f32 0.0, %v1294
    %v1296 = vpop.f32.mrb[0].mxu0
    %1297 = vmatprep.mubr.bf16.mxu0 0
    %1298 = vmatmul.mubr.bf16.gmra.mrb[0].mxu0 %v1099
    %v1299 = vpop.f32.mrb[0].mxu0
    %v1300 = vadd.f32 0.0, %v1299
    %v1301 = vpop.f32.mrb[0].mxu0
    %v1302 = vpop.f32.mrb[0].mxu0
    %v1303 = vadd.f32 0.0, %v1302
    %v1304 = vpop.f32.mrb[0].mxu0
    %1305 = vmatprep.mubr.bf16.mxu0 0
    %1306 = vmatmul.mubr.bf16.gmra.mrb[0].mxu0 %v1100
    %v1307 = vpop.f32.mrb[0].mxu0
    %v1308 = vadd.f32 0.0, %v1307
    %v1309 = vpop.f32.mrb[0].mxu0
    %v1310 = vpop.f32.mrb[0].mxu0
    %v1311 = vadd.f32 0.0, %v1310
    %v1312 = vpop.f32.mrb[0].mxu0
    %1313 = vmatprep.mubr.bf16.mxu0 0
    %1314 = vmatmul.mubr.bf16.gmra.mrb[0].mxu0 %v1101
    %v1315 = vpop.f32.mrb[0].mxu0
    %v1316 = vadd.f32 0.0, %v1315
    %v1317 = vpop.f32.mrb[0].mxu0
    %v1318 = vpop.f32.mrb[0].mxu0
    %v1319 = vadd.f32 0.0, %v1318
    %v1320 = vpop.f32.mrb[0].mxu0
    %1321 = vmatprep.mubr.bf16.mxu0 0
    %1322 = vmatmul.mubr.bf16.gmra.mrb[0].mxu0 %v1102
    %v1323 = vpop.f32.mrb[0].mxu0
    %v1324 = vadd.f32 0.0, %v1323
    %v1325 = vpop.f32.mrb[0].mxu0
    %v1326 = vpop.f32.mrb[0].mxu0
    %v1327 = vadd.f32 0.0, %v1326
    %v1328 = vpop.f32.mrb[0].mxu0
    %1329 = vmatprep.mubr.bf16.mxu0 0
    %1330 = vmatmul.mubr.bf16.gmra.mrb[0].mxu0 %v1103
    %v1331 = vpop.f32.mrb[0].mxu0
    %v1332 = vadd.f32 0.0, %v1331
    %v1333 = vpop.f32.mrb[0].mxu0
    %v1334 = vpop.f32.mrb[0].mxu0
    %v1335 = vadd.f32 0.0, %v1334
    %v1336 = vpop.f32.mrb[0].mxu0
    %1337 = vmatprep.mubr.bf16.mxu0 0
    %1338 = vmatmul.mubr.bf16.gmra.mrb[0].mxu0 %v1104
    %v1339 = vpop.f32.mrb[0].mxu0
    %v1340 = vadd.f32 0.0, %v1339
    %v1341 = vpop.f32.mrb[0].mxu0
    %v1342 = vpop.f32.mrb[0].mxu0
    %v1343 = vadd.f32 0.0, %v1342
    %v1344 = vpop.f32.mrb[0].mxu0
    %1345 = vmatprep.mubr.bf16.mxu0 0
    %1346 = vmatmul.mubr.bf16.gmra.mrb[0].mxu0 %v1105
    %v1347 = vpop.f32.mrb[0].mxu0
    %v1348 = vadd.f32 0.0, %v1347
    %v1349 = vpop.f32.mrb[0].mxu0
    %v1350 = vpop.f32.mrb[0].mxu0
    %v1351 = vadd.f32 0.0, %v1350
    %v1352 = vpop.f32.mrb[0].mxu0
    %1353 = vmatprep.mubr.bf16.mxu0 0
    %1354 = vmatmul.mubr.bf16.gmra.mrb[0].mxu0 %v1106
    %v1355 = vpop.f32.mrb[0].mxu0
    %v1356 = vadd.f32 0.0, %v1355
    %v1357 = vpop.f32.mrb[0].mxu0
    %v1358 = vpop.f32.mrb[0].mxu0
    %v1359 = vadd.f32 0.0, %v1358
    %v1360 = vpop.f32.mrb[0].mxu0
    %1361 = vmatprep.mubr.bf16.mxu0 0
    %1362 = vmatmul.mubr.bf16.gmra.mrb[0].mxu0 %v1107
    %v1363 = vpop.f32.mrb[0].mxu0
    %v1364 = vadd.f32 0.0, %v1363
    %v1365 = vpop.f32.mrb[0].mxu0
    %v1366 = vpop.f32.mrb[0].mxu0
    %v1367 = vadd.f32 0.0, %v1366
    %v1368 = vpop.f32.mrb[0].mxu0
    %1369 = vmatprep.mubr.bf16.mxu0 0
    %1370 = vmatmul.mubr.bf16.gmra.mrb[0].mxu0 %v1108
    %v1371 = vpop.f32.mrb[0].mxu0
    %v1372 = vadd.f32 0.0, %v1371
    %v1373 = vpop.f32.mrb[0].mxu0
    %v1374 = vpop.f32.mrb[0].mxu0
    %v1375 = vadd.f32 0.0, %v1374
    %v1376 = vpop.f32.mrb[0].mxu0
    %1377 = vmatprep.mubr.bf16.mxu0 0
    %1378 = vmatmul.mubr.bf16.gmra.mrb[0].mxu0 %v1109
    %v1379 = vpop.f32.mrb[0].mxu0
    %v1380 = vadd.f32 0.0, %v1379
    %v1381 = vpop.f32.mrb[0].mxu0
    %v1382 = vpop.f32.mrb[0].mxu0
    %v1383 = vadd.f32 0.0, %v1382
    %v1384 = vpop.f32.mrb[0].mxu0
    %1385 = vmatprep.mubr.bf16.mxu0 0
    %1386 = vmatmul.mubr.bf16.gmra.mrb[0].mxu0 %v1110
    %v1387 = vpop.f32.mrb[0].mxu0
    %v1388 = vadd.f32 0.0, %v1387
    %v1389 = vpop.f32.mrb[0].mxu0
    %v1390 = vpop.f32.mrb[0].mxu0
    %v1391 = vadd.f32 0.0, %v1390
    %v1392 = vpop.f32.mrb[0].mxu0
    %1393 = vmatprep.mubr.bf16.mxu0 0
    %1394 = vmatmul.mubr.bf16.gmra.mrb[0].mxu0 %v1111
    %v1395 = vpop.f32.mrb[0].mxu0
    %v1396 = vadd.f32 0.0, %v1395
    %v1397 = vpop.f32.mrb[0].mxu0
    %v1398 = vpop.f32.mrb[0].mxu0
    %v1399 = vadd.f32 0.0, %v1398
    %v1400 = vpop.f32.mrb[0].mxu0
    %1401 = vmatprep.mubr.bf16.mxu0 0
    %1402 = vmatmul.mubr.bf16.gmra.mrb[0].mxu0 %v1112
    %v1403 = vpop.f32.mrb[0].mxu0
    %v1404 = vadd.f32 0.0, %v1403
    %v1405 = vpop.f32.mrb[0].mxu0
    %v1406 = vpop.f32.mrb[0].mxu0
    %v1407 = vadd.f32 0.0, %v1406
    %v1408 = vpop.f32.mrb[0].mxu0
    %1409 = vmatprep.mubr.bf16.mxu0 0
    %1410 = vmatmul.mubr.bf16.gmra.mrb[0].mxu0 %v1113
    %v1411 = vpop.f32.mrb[0].mxu0
    %v1412 = vadd.f32 0.0, %v1411
    %v1413 = vpop.f32.mrb[0].mxu0
    %v1414 = vpop.f32.mrb[0].mxu0
    %v1415 = vadd.f32 0.0, %v1414
    %v1416 = vpop.f32.mrb[0].mxu0
    %1417 = vmatprep.mubr.bf16.mxu0 0
    %1418 = vmatmul.mubr.bf16.gmra.mrb[0].mxu0 %v1114
    %v1419 = vpop.f32.mrb[0].mxu0
    %v1420 = vadd.f32 0.0, %v1419
    %v1421 = vpop.f32.mrb[0].mxu0
    %v1422 = vpop.f32.mrb[0].mxu0
    %v1423 = vadd.f32 0.0, %v1422
    %v1424 = vpop.f32.mrb[0].mxu0
    %1425 = vmatprep.mubr.bf16.mxu0 0
    %1426 = vmatmul.mubr.bf16.gmra.mrb[0].mxu0 %v1115
    %v1427 = vpop.f32.mrb[0].mxu0
    %v1428 = vadd.f32 0.0, %v1427
    %v1429 = vpop.f32.mrb[0].mxu0
    %v1430 = vpop.f32.mrb[0].mxu0
    %v1431 = vadd.f32 0.0, %v1430
    %v1432 = vpop.f32.mrb[0].mxu0
    %1433 = vmatprep.mubr.bf16.mxu0 0
    %1434 = vmatmul.mubr.bf16.gmra.mrb[0].mxu0 %v1116
    %v1435 = vpop.f32.mrb[0].mxu0
    %v1436 = vadd.f32 0.0, %v1435
    %v1437 = vpop.f32.mrb[0].mxu0
    %v1438 = vpop.f32.mrb[0].mxu0
    %v1439 = vadd.f32 0.0, %v1438
    %v1440 = vpop.f32.mrb[0].mxu0
    %1441 = vmatprep.mubr.bf16.mxu0 0
    %1442 = vmatmul.mubr.bf16.gmra.mrb[0].mxu0 %v1117
    %v1443 = vpop.f32.mrb[0].mxu0
    %v1444 = vadd.f32 0.0, %v1443
    %v1445 = vpop.f32.mrb[0].mxu0
    %v1446 = vpop.f32.mrb[0].mxu0
    %v1447 = vadd.f32 0.0, %v1446
    %v1448 = vpop.f32.mrb[0].mxu0
    %1449 = vmatprep.mubr.bf16.mxu0 0
    %1450 = vmatmul.mubr.bf16.gmra.mrb[0].mxu0 %v1118
    %v1451 = vpop.f32.mrb[0].mxu0
    %v1452 = vadd.f32 0.0, %v1451
    %v1453 = vpop.f32.mrb[0].mxu0
    %v1454 = vpop.f32.mrb[0].mxu0
    %v1455 = vadd.f32 0.0, %v1454
    %v1456 = vpop.f32.mrb[0].mxu0
    %1457 = vmatprep.mubr.bf16.mxu0 0
    %1458 = vmatmul.mubr.bf16.gmra.mrb[0].mxu0 %v1119
    %v1459 = vpop.f32.mrb[0].mxu0
    %v1460 = vadd.f32 0.0, %v1459
    %v1461 = vpop.f32.mrb[0].mxu0
    %v1462 = vpop.f32.mrb[0].mxu0
    %v1463 = vadd.f32 0.0, %v1462
    %v1464 = vpop.f32.mrb[0].mxu0
    %1465 = vmatprep.mubr.bf16.mxu0 0
    %1466 = vmatmul.mubr.bf16.gmra.mrb[0].mxu0 %v1120
    %v1467 = vpop.f32.mrb[0].mxu0
    %v1468 = vadd.f32 0.0, %v1467
    %v1469 = vpop.f32.mrb[0].mxu0
    %v1470 = vpop.f32.mrb[0].mxu0
    %v1471 = vadd.f32 0.0, %v1470
    %v1472 = vpop.f32.mrb[0].mxu0
    %1473 = vdwg.mxu0
    %v1474 = vadd.f32 %v50, %v1220
    %v1475 = vadd.f32 %v51, %v1223
    %v1476 = vadd.f32 %v52, %v1228
    %v1477 = vadd.f32 %v53, %v1231
    %v1478 = vadd.f32 %v54, %v1236
    %v1479 = vadd.f32 %v55, %v1239
    %v1480 = vadd.f32 %v56, %v1244
    %v1481 = vadd.f32 %v57, %v1247
    %v1482 = vadd.f32 %v58, %v1252
    %v1483 = vadd.f32 %v59, %v1255
    %v1484 = vadd.f32 %v60, %v1260
    %v1485 = vadd.f32 %v61, %v1263
    %v1486 = vadd.f32 %v62, %v1268
    %v1487 = vadd.f32 %v63, %v1271
    %v1488 = vadd.f32 %v64, %v1276
    %v1489 = vadd.f32 %v65, %v1279
    %v1490 = vadd.f32 %v66, %v1284
    %v1491 = vadd.f32 %v67, %v1287
    %v1492 = vadd.f32 %v68, %v1292
    %v1493 = vadd.f32 %v69, %v1295
    %v1494 = vadd.f32 %v70, %v1300
    %v1495 = vadd.f32 %v71, %v1303
    %v1496 = vadd.f32 %v72, %v1308
    %v1497 = vadd.f32 %v73, %v1311
    %v1498 = vadd.f32 %v74, %v1316
    %v1499 = vadd.f32 %v75, %v1319
    %v1500 = vadd.f32 %v76, %v1324
    %v1501 = vadd.f32 %v77, %v1327
    %v1502 = vadd.f32 %v78, %v1332
    %v1503 = vadd.f32 %v79, %v1335
    %v1504 = vadd.f32 %v80, %v1340
    %v1505 = vadd.f32 %v81, %v1343
    %v1506 = vadd.f32 %v82, %v1348
    %v1507 = vadd.f32 %v83, %v1351
    %v1508 = vadd.f32 %v84, %v1356
    %v1509 = vadd.f32 %v85, %v1359
    %v1510 = vadd.f32 %v86, %v1364
    %v1511 = vadd.f32 %v87, %v1367
    %v1512 = vadd.f32 %v88, %v1372
    %v1513 = vadd.f32 %v89, %v1375
    %v1514 = vadd.f32 %v90, %v1380
    %v1515 = vadd.f32 %v91, %v1383
    %v1516 = vadd.f32 %v92, %v1388
    %v1517 = vadd.f32 %v93, %v1391
    %v1518 = vadd.f32 %v94, %v1396
    %v1519 = vadd.f32 %v95, %v1399
    %v1520 = vadd.f32 %v96, %v1404
    %v1521 = vadd.f32 %v97, %v1407
    %v1522 = vadd.f32 %v98, %v1412
    %v1523 = vadd.f32 %v99, %v1415
    %v1524 = vadd.f32 %v100, %v1420
    %v1525 = vadd.f32 %v101, %v1423
    %v1526 = vadd.f32 %v102, %v1428
    %v1527 = vadd.f32 %v103, %v1431
    %v1528 = vadd.f32 %v104, %v1436
    %v1529 = vadd.f32 %v105, %v1439
    %v1530 = vadd.f32 %v106, %v1444
    %v1531 = vadd.f32 %v107, %v1447
    %v1532 = vadd.f32 %v108, %v1452
    %v1533 = vadd.f32 %v109, %v1455
    %v1534 = vadd.f32 %v110, %v1460
    %v1535 = vadd.f32 %v111, %v1463
    %v1536 = vadd.f32 %v112, %v1468
    %v1537 = vadd.f32 %v113, %v1471
    %v1539 = vlaneseq
    %v1540 = vshrl.u32 %v1539, 7
    %v1541 = vsub.s32 0, %v1540
    %v1542 = vrot.slane %v114, %v1541
    %v1544 = vadd.f32 %v1474, %v1542
    %v1545 = vadd.f32 %v1475, %v1542
    %v1546 = vadd.f32 %v1476, %v1542
    %v1547 = vadd.f32 %v1477, %v1542
    %v1548 = vadd.f32 %v1478, %v1542
    %v1549 = vadd.f32 %v1479, %v1542
    %v1550 = vadd.f32 %v1480, %v1542
    %v1551 = vadd.f32 %v1481, %v1542
    %v1552 = vadd.f32 %v1482, %v1542
    %v1553 = vadd.f32 %v1483, %v1542
    %v1554 = vadd.f32 %v1484, %v1542
    %v1555 = vadd.f32 %v1485, %v1542
    %v1556 = vadd.f32 %v1486, %v1542
    %v1557 = vadd.f32 %v1487, %v1542
    %v1558 = vadd.f32 %v1488, %v1542
    %v1559 = vadd.f32 %v1489, %v1542
    %v1560 = vadd.f32 %v1490, %v1542
    %v1561 = vadd.f32 %v1491, %v1542
    %v1562 = vadd.f32 %v1492, %v1542
    %v1563 = vadd.f32 %v1493, %v1542
    %v1564 = vadd.f32 %v1494, %v1542
    %v1565 = vadd.f32 %v1495, %v1542
    %v1566 = vadd.f32 %v1496, %v1542
    %v1567 = vadd.f32 %v1497, %v1542
    %v1568 = vadd.f32 %v1498, %v1542
    %v1569 = vadd.f32 %v1499, %v1542
    %v1570 = vadd.f32 %v1500, %v1542
    %v1571 = vadd.f32 %v1501, %v1542
    %v1572 = vadd.f32 %v1502, %v1542
    %v1573 = vadd.f32 %v1503, %v1542
    %v1574 = vadd.f32 %v1504, %v1542
    %v1575 = vadd.f32 %v1505, %v1542
    %v1576 = vadd.f32 %v1506, %v1542
    %v1577 = vadd.f32 %v1507, %v1542
    %v1578 = vadd.f32 %v1508, %v1542
    %v1579 = vadd.f32 %v1509, %v1542
    %v1580 = vadd.f32 %v1510, %v1542
    %v1581 = vadd.f32 %v1511, %v1542
    %v1582 = vadd.f32 %v1512, %v1542
    %v1583 = vadd.f32 %v1513, %v1542
    %v1584 = vadd.f32 %v1514, %v1542
    %v1585 = vadd.f32 %v1515, %v1542
    %v1586 = vadd.f32 %v1516, %v1542
    %v1587 = vadd.f32 %v1517, %v1542
    %v1588 = vadd.f32 %v1518, %v1542
    %v1589 = vadd.f32 %v1519, %v1542
    %v1590 = vadd.f32 %v1520, %v1542
    %v1591 = vadd.f32 %v1521, %v1542
    %v1592 = vadd.f32 %v1522, %v1542
    %v1593 = vadd.f32 %v1523, %v1542
    %v1594 = vadd.f32 %v1524, %v1542
    %v1595 = vadd.f32 %v1525, %v1542
    %v1596 = vadd.f32 %v1526, %v1542
    %v1597 = vadd.f32 %v1527, %v1542
    %v1598 = vadd.f32 %v1528, %v1542
    %v1599 = vadd.f32 %v1529, %v1542
    %v1600 = vadd.f32 %v1530, %v1542
    %v1601 = vadd.f32 %v1531, %v1542
    %v1602 = vadd.f32 %v1532, %v1542
    %v1603 = vadd.f32 %v1533, %v1542
    %v1604 = vadd.f32 %v1534, %v1542
    %v1605 = vadd.f32 %v1535, %v1542
    %v1606 = vadd.f32 %v1536, %v1542
    %v1607 = vadd.f32 %v1537, %v1542
    %1608 = vst [vmem:[#allocation7] sm:$0xff] %v1544
    %1609 = vst [vmem:[#allocation7 + $0x8] sm:$0xff] %v1545
    %1610 = vst [vmem:[#allocation7 + $0x10] sm:$0xff] %v1546
    %1611 = vst [vmem:[#allocation7 + $0x18] sm:$0xff] %v1547
    %1612 = vst [vmem:[#allocation7 + $0x20] sm:$0xff] %v1548
    %1613 = vst [vmem:[#allocation7 + $0x28] sm:$0xff] %v1549
    %1614 = vst [vmem:[#allocation7 + $0x30] sm:$0xff] %v1550
    %1615 = vst [vmem:[#allocation7 + $0x38] sm:$0xff] %v1551
    %1616 = vst [vmem:[#allocation7 + $0x40] sm:$0xff] %v1552
    %1617 = vst [vmem:[#allocation7 + $0x48] sm:$0xff] %v1553
    %1618 = vst [vmem:[#allocation7 + $0x50] sm:$0xff] %v1554
    %1619 = vst [vmem:[#allocation7 + $0x58] sm:$0xff] %v1555
    %1620 = vst [vmem:[#allocation7 + $0x60] sm:$0xff] %v1556
    %1621 = vst [vmem:[#allocation7 + $0x68] sm:$0xff] %v1557
    %1622 = vst [vmem:[#allocation7 + $0x70] sm:$0xff] %v1558
    %1623 = vst [vmem:[#allocation7 + $0x78] sm:$0xff] %v1559
    %1624 = vst [vmem:[#allocation7 + $0x80] sm:$0xff] %v1560
    %1625 = vst [vmem:[#allocation7 + $0x88] sm:$0xff] %v1561
    %1626 = vst [vmem:[#allocation7 + $0x90] sm:$0xff] %v1562
    %1627 = vst [vmem:[#allocation7 + $0x98] sm:$0xff] %v1563
    %1628 = vst [vmem:[#allocation7 + $0xa0] sm:$0xff] %v1564
    %1629 = vst [vmem:[#allocation7 + $0xa8] sm:$0xff] %v1565
    %1630 = vst [vmem:[#allocation7 + $0xb0] sm:$0xff] %v1566
    %1631 = vst [vmem:[#allocation7 + $0xb8] sm:$0xff] %v1567
    %1632 = vst [vmem:[#allocation7 + $0xc0] sm:$0xff] %v1568
    %1633 = vst [vmem:[#allocation7 + $0xc8] sm:$0xff] %v1569
    %1634 = vst [vmem:[#allocation7 + $0xd0] sm:$0xff] %v1570
    %1635 = vst [vmem:[#allocation7 + $0xd8] sm:$0xff] %v1571
    %1636 = vst [vmem:[#allocation7 + $0xe0] sm:$0xff] %v1572
    %1637 = vst [vmem:[#allocation7 + $0xe8] sm:$0xff] %v1573
    %1638 = vst [vmem:[#allocation7 + $0xf0] sm:$0xff] %v1574
    %1639 = vst [vmem:[#allocation7 + $0xf8] sm:$0xff] %v1575
    %1640 = vst [vmem:[#allocation7 + $0x100] sm:$0xff] %v1576
    %1641 = vst [vmem:[#allocation7 + $0x108] sm:$0xff] %v1577
    %1642 = vst [vmem:[#allocation7 + $0x110] sm:$0xff] %v1578
    %1643 = vst [vmem:[#allocation7 + $0x118] sm:$0xff] %v1579
    %1644 = vst [vmem:[#allocation7 + $0x120] sm:$0xff] %v1580
    %1645 = vst [vmem:[#allocation7 + $0x128] sm:$0xff] %v1581
    %1646 = vst [vmem:[#allocation7 + $0x130] sm:$0xff] %v1582
    %1647 = vst [vmem:[#allocation7 + $0x138] sm:$0xff] %v1583
    %1648 = vst [vmem:[#allocation7 + $0x140] sm:$0xff] %v1584
    %1649 = vst [vmem:[#allocation7 + $0x148] sm:$0xff] %v1585
    %1650 = vst [vmem:[#allocation7 + $0x150] sm:$0xff] %v1586
    %1651 = vst [vmem:[#allocation7 + $0x158] sm:$0xff] %v1587
    %1652 = vst [vmem:[#allocation7 + $0x160] sm:$0xff] %v1588
    %1653 = vst [vmem:[#allocation7 + $0x168] sm:$0xff] %v1589
    %1654 = vst [vmem:[#allocation7 + $0x170] sm:$0xff] %v1590
    %1655 = vst [vmem:[#allocation7 + $0x178] sm:$0xff] %v1591
    %1656 = vst [vmem:[#allocation7 + $0x180] sm:$0xff] %v1592
    %1657 = vst [vmem:[#allocation7 + $0x188] sm:$0xff] %v1593
    %1658 = vst [vmem:[#allocation7 + $0x190] sm:$0xff] %v1594
    %1659 = vst [vmem:[#allocation7 + $0x198] sm:$0xff] %v1595
    %1660 = vst [vmem:[#allocation7 + $0x1a0] sm:$0xff] %v1596
    %1661 = vst [vmem:[#allocation7 + $0x1a8] sm:$0xff] %v1597
    %1662 = vst [vmem:[#allocation7 + $0x1b0] sm:$0xff] %v1598
    %1663 = vst [vmem:[#allocation7 + $0x1b8] sm:$0xff] %v1599
    %1664 = vst [vmem:[#allocation7 + $0x1c0] sm:$0xff] %v1600
    %1665 = vst [vmem:[#allocation7 + $0x1c8] sm:$0xff] %v1601
    %1666 = vst [vmem:[#allocation7 + $0x1d0] sm:$0xff] %v1602
    %1667 = vst [vmem:[#allocation7 + $0x1d8] sm:$0xff] %v1603
    %1668 = vst [vmem:[#allocation7 + $0x1e0] sm:$0xff] %v1604
    %1669 = vst [vmem:[#allocation7 + $0x1e8] sm:$0xff] %v1605
    %1670 = vst [vmem:[#allocation7 + $0x1f0] sm:$0xff] %v1606
    %1671 = vst [vmem:[#allocation7 + $0x1f8] sm:$0xff] %v1607
    // Predicated region
    $region30: #{tpu_custom_call.1} parent=1 // pred_check
      _
    $region31: #{tpu_custom_call.1} parent=1 // pred_check_branch
      %1673 = sbr.rel (0) target = $region33
    $region32: #{tpu_custom_call.1} parent=1 // pred_region
      %s1675 = ssub.s32 8192, 8192
      %1676 = vsyncadd [#allocation4], %s1675
      %s1677 = sshll.u32 [#allocation7], 4
      %s1678 = int_to_ptr.vmem [resolvable:$true] %s1677
      %1683 = dma.vmem_to_hbm [thread:$0]  %s1678, 8192, %s5, [#allocation4], 128, 128, 8
    $region33: #{tpu_custom_call.1} parent=1 // pred_fallthru
      _
    // Predicated region
    $region34: #{tpu_custom_call.1} parent=1 // pred_check
      _
    $region35: #{tpu_custom_call.1} parent=1 // pred_check_branch
      %1685 = sbr.rel (0) target = $region37
    $region36: #{tpu_custom_call.1} parent=1 // pred_region
      %1686 = dma.done [#allocation4], 8192
    $region37: #{tpu_custom_call.1} parent=1 // pred_fallthru
      _
    %1687 = vsyncpa [#allocation3], 1
    %1688 = vsyncpa [#allocation6], 1
    %1689 = vsyncpa [#allocation4], 1

</llo_original>
